<compile_context>
chip_gen: v5e
topology: v5e:2x2
jax: 0.10.0
libtpu: 0.0.40
codegen_flags: <defaults>
</compile_context>

<pallas_src>
import jax
import jax.numpy as jnp
from jax.experimental import pallas as pl
from jax.experimental.pallas import tpu as pltpu


def gcn_kernel(a_ref, x_ref, sel_lw_ref, repl_ref, bd_ref,
               w1_ref, b1_ref, w2_ref, b2_ref,
               w3_ref, b3_ref, w4_ref, b4_ref,
               out_ref):
    # a_ref:      (M, N)   a[g*N+i, j] = weight of edge j->i in graph g (M = Gb*N)
    # x_ref:      (M, F_in)
    # sel_lw_ref: (Gb, M)  block-diag readout rows with lw/N baked in
    # repl_ref:   (N, M)   replication matrix: (a @ repl)[r, c] = a[r, c % N]
    # bd_ref:     (M, M)   f32 block-diagonal 0/1 mask
    a = a_ref[...]

    # --- EdgeWeightNorm(norm='right'): w_e / weighted in-degree(dst) -------
    deg = jnp.sum(a, axis=-1, keepdims=True)                 # (M, 1)
    a_n = a * pl.reciprocal(deg, approx=False)               # exact reciprocal

    # --- Pack the Gb graphs as one block-diagonal A_norm of shape (M, M) ---
    a_bd = jnp.dot(a_n, repl_ref[...],
                   preferred_element_type=jnp.float32) * bd_ref[...]

    # --- conv1 -> relu -> dropout (identity, inference) --------------------
    # Reassociated: feature transform first so the big (M,M) matmul is 32-wide.
    h0 = jnp.dot(x_ref[...], w1_ref[...], preferred_element_type=jnp.float32)
    h = jnp.dot(a_bd, h0, preferred_element_type=jnp.float32) + b1_ref[...]
    h = jnp.maximum(h, 0.0)
    # TODO(synk): dropout layers are identity here (inference-mode semantics).

    # --- conv2 -> relu -> dropout (identity) -------------------------------
    h2 = jnp.dot(h, w2_ref[...], preferred_element_type=jnp.float32)
    h = jnp.dot(a_bd, h2, preferred_element_type=jnp.float32) + b2_ref[...]
    h = jnp.maximum(h, 0.0)                                   # (M, H2)

    # --- dgl.mean_nodes(g, 'h', 'lw'): mean over nodes of (lw * h) ---------
    # sel_lw already carries the per-node readout weight and the 1/N factor.
    hg = jnp.dot(sel_lw_ref[...], h, preferred_element_type=jnp.float32)  # (Gb, H2)

    # --- dense1 -> relu -> dropout (identity) ------------------------------
    o1 = jnp.dot(hg, w3_ref[...], preferred_element_type=jnp.float32) + b3_ref[...]
    o1 = jnp.maximum(o1, 0.0)

    # --- classify -> softmax(dim=1), lane-dense (padded logits have -1e30) --
    o2 = jnp.dot(o1, w4_ref[...], preferred_element_type=jnp.float32) + b4_ref[...]
    m = jnp.max(o2, axis=-1, keepdims=True)
    e = jnp.exp(o2 - m)                                       # padded lanes -> 0
    probs = e * pl.reciprocal(jnp.sum(e, axis=-1, keepdims=True), approx=False)

    out_ref[...] = probs.astype(out_ref.dtype)


def gcn_forward(adj, x, lw, params, *, graphs_per_block=None):
    """adj: (G, N, N) adj[g, dst, src]; x: (G, N, F_in); lw: (G, N, 1)."""
    w1, b1, w2, b2, w3, b3, w4, b4 = params
    G, N, _ = adj.shape
    F_in = x.shape[-1]
    C = w4.shape[1]
    C_PAD = 128                       # lane-dense output / classifier width

    if graphs_per_block is None:
        # M = Gb*N = 256 fills the 2x256x256 MXU on v6e/v7x and halves the grid
        # step count vs M=128.  (On v5e, 128 // N is the MXU-natural tile; 256
        # is still correct and mainly trades wasted block-diag FLOPs for fewer
        # ~600-cycle grid steps.)
        graphs_per_block = max(1, 256 // N)
    Gb = graphs_per_block

    # Pad the graph batch up to a multiple of Gb with harmless dummy graphs
    # (identity adjacency so their weighted in-degree is > 0 -> no NaNs).
    G_pad = -(-G // Gb) * Gb
    if G_pad != G:
        pad = G_pad - G
        adj = jnp.concatenate(
            [adj, jnp.broadcast_to(jnp.eye(N, dtype=adj.dtype), (pad, N, N))], axis=0)
        x = jnp.concatenate([x, jnp.zeros((pad, N, F_in), x.dtype)], axis=0)
        lw = jnp.concatenate([lw, jnp.zeros((pad, N, 1), lw.dtype)], axis=0)

    M = Gb * N

    # Wrapper-side layout plumbing: stack per-graph node rows so the kernel
    # sees plain 2D (Gb*N, ...) tiles and needs no in-kernel reshapes.
    adj2 = adj.reshape(G_pad * N, N)
    x2 = x.reshape(G_pad * N, F_in)

    # --- Hoisted grid-invariant constants (resident in VMEM) ----------------
    # Replication matrix: (a @ repl)[r, c] = a[r, c % N]
    repl = (jnp.arange(M, dtype=jnp.int32)[None, :] % N
            == jnp.arange(N, dtype=jnp.int32)[:, None]).astype(jnp.float32)   # (N, M)
    # Block-diagonal 0/1 mask.
    blk = jnp.arange(M, dtype=jnp.int32) // N
    bd_mask = (blk[:, None] == blk[None, :]).astype(jnp.float32)              # (M, M)

    # Per-graph readout rows: sel_lw[g, c] = lw[g, c % N] / N if c is inside
    # graph (g % Gb)'s block, else 0.  Folds lw, the 1/N factor and the
    # per-graph selection into a single matmul operand.
    gi = (jnp.arange(G_pad, dtype=jnp.int32) % Gb)[:, None]                   # (G_pad, 1)
    col_blk = (jnp.arange(M, dtype=jnp.int32) // N)[None, :]                  # (1, M)
    col_in = jnp.arange(M, dtype=jnp.int32) % N                               # (M,)
    lw_rows = lw[..., 0][:, col_in] * (1.0 / N)                               # (G_pad, M)
    sel_lw = jnp.where(col_blk == gi, lw_rows, 0.0).astype(jnp.float32)       # (G_pad, M)

    # Lane-dense classifier: pad class dim to 128 output lanes; padded logits
    # get a -1e30 bias so softmax over 128 lanes equals softmax over the real C.
    w4p = jnp.concatenate(
        [w4, jnp.zeros((w4.shape[0], C_PAD - C), w4.dtype)], axis=1)
    b4p = jnp.concatenate(
        [b4, jnp.full((1, C_PAD - C), -1e30, b4.dtype)], axis=1)

    def full_spec(arr):
        # Full-array block, same block index every grid step (stays resident).
        nd = arr.ndim
        return pl.BlockSpec(arr.shape, lambda g, _nd=nd: (0,) * _nd)

    grid_spec = pltpu.PrefetchScalarGridSpec(
        num_scalar_prefetch=0,
        grid=(G_pad // Gb,),
        in_specs=[
            pl.BlockSpec((M, N), lambda g: (g, 0)),       # stacked adjacency rows
            pl.BlockSpec((M, F_in), lambda g: (g, 0)),    # stacked node features
            pl.BlockSpec((Gb, M), lambda g: (g, 0)),      # readout selection (lw/N)
            full_spec(repl), full_spec(bd_mask),
            full_spec(w1), full_spec(b1),
            full_spec(w2), full_spec(b2),
            full_spec(w3), full_spec(b3),
            full_spec(w4p), full_spec(b4p),
        ],
        out_specs=pl.BlockSpec((Gb, C_PAD), lambda g: (g, 0)),
    )

    out = pl.pallas_call(
        gcn_kernel,
        out_shape=jax.ShapeDtypeStruct((G_pad, C_PAD), jnp.float32),
        grid_spec=grid_spec,
        # Each grid step writes a disjoint (Gb, 128) output slab -> safe to mark
        # parallel; lets v7x shard the graph-batch axis across both TensorCores.
        compiler_params=pltpu.CompilerParams(
            dimension_semantics=("parallel",)),
    )(adj2, x2, sel_lw, repl, bd_mask, w1, b1, w2, b2, w3, b3, w4p, b4p)

    return out[:G, :C]


def gcn_reference(adj, x, lw, params):
    w1, b1, w2, b2, w3, b3, w4, b4 = params
    deg = adj.sum(-1, keepdims=True)
    a_norm = adj / deg
    h = jax.nn.relu(jnp.einsum('gnm,gmf->gnf', a_norm, x) @ w1 + b1)
    h = jax.nn.relu(jnp.einsum('gnm,gmf->gnf', a_norm, h) @ w2 + b2)
    hg = jnp.mean(lw * h, axis=1)                 # (G, H2)
    o1 = jax.nn.relu(hg @ w3 + b3)
    o2 = o1 @ w4 + b4
    return jax.nn.softmax(o2, axis=1)


if __name__ == "__main__":
    # Shapes consistent with the module:
    # in_feats=8, h1_feats=32, h2_feats=32, h3_feats=16, num_classes=3.
    # G=20 graphs of N=16 nodes -> Gb=16 graphs per block (256-row tiles),
    # grid has 2 steps (even split on v7x) and exercises the padding path.
    G, N = 20, 16
    F_in, H1, H2, H3, C = 8, 32, 32, 16, 3

    key = jax.random.PRNGKey(0)
    ks = jax.random.split(key, 12)

    # Dense adjacency with non-negative edge weights; add self-loops so every
    # destination node has a strictly positive weighted in-degree.
    raw = jax.random.uniform(ks[0], (G, N, N), dtype=jnp.float32)
    mask = (jax.random.uniform(ks[1], (G, N, N)) < 0.3).astype(jnp.float32)
    adj = raw * mask + jnp.eye(N, dtype=jnp.float32)[None, :, :]

    x = jax.random.normal(ks[2], (G, N, F_in), dtype=jnp.float32)
    lw = jax.random.uniform(ks[3], (G, N, 1), dtype=jnp.float32) + 0.1

    def init_w(k, fan_in, fan_out):
        return (jax.random.normal(k, (fan_in, fan_out), dtype=jnp.float32)
                / jnp.sqrt(jnp.float32(fan_in)))

    params = (
        init_w(ks[4], F_in, H1), jax.random.normal(ks[5], (1, H1)) * 0.01,
        init_w(ks[6], H1, H2),   jax.random.normal(ks[7], (1, H2)) * 0.01,
        init_w(ks[8], H2, H3),   jax.random.normal(ks[9], (1, H3)) * 0.01,
        init_w(ks[10], H3, C),   jax.random.normal(ks[11], (1, C)) * 0.01,
    )
    params = tuple(p.astype(jnp.float32) for p in params)

    out = gcn_forward(adj, x, lw, params)
    out = jax.block_until_ready(out)

    ref = gcn_reference(adj, x, lw, params)
    assert out.shape == (G, C)
    # Small cushion over 1e-5: conv1 is reassociated (A @ (x @ W) vs (A @ x) @ W),
    # which introduces f32 rounding differences relative to the reference order.
    assert jnp.allclose(out, ref, atol=2e-5, rtol=2e-5), (out, ref)

    print("KERNEL_OK")
</pallas_src>

<mosaic_0001>
module attributes {stable_mosaic.version = 11 : i64} {
  func.func @gcn_kernel(%arg0: i32, %arg1: memref<256x16xf32, #tpu.memory_space<vmem>>, %arg2: memref<256x8xf32, #tpu.memory_space<vmem>>, %arg3: memref<16x256xf32, #tpu.memory_space<vmem>>, %arg4: memref<16x256xf32, #tpu.memory_space<vmem>>, %arg5: memref<256x256xf32, #tpu.memory_space<vmem>>, %arg6: memref<8x32xf32, #tpu.memory_space<vmem>>, %arg7: memref<1x32xf32, #tpu.memory_space<vmem>>, %arg8: memref<32x32xf32, #tpu.memory_space<vmem>>, %arg9: memref<1x32xf32, #tpu.memory_space<vmem>>, %arg10: memref<32x16xf32, #tpu.memory_space<vmem>>, %arg11: memref<1x16xf32, #tpu.memory_space<vmem>>, %arg12: memref<16x128xf32, #tpu.memory_space<vmem>>, %arg13: memref<1x128xf32, #tpu.memory_space<vmem>>, %arg14: memref<16x128xf32, #tpu.memory_space<vmem>>) attributes {dimension_semantics = [#tpu.dimension_semantics<parallel>], iteration_bounds = array<i64: 2>, scalar_prefetch = 0 : i64, scratch_operands = 0 : i64, tpu.core_type = #tpu.core_type<tc>, window_params = [{transform_indices = @transform_0, window_bounds = array<i64: 256, 16>}, {transform_indices = @transform_1, window_bounds = array<i64: 256, 8>}, {transform_indices = @transform_2, window_bounds = array<i64: 16, 256>}, {pipeline_mode = #tpu.pipeline_mode<synchronous>, transform_indices = @transform_3, window_bounds = array<i64: 16, 256>}, {pipeline_mode = #tpu.pipeline_mode<synchronous>, transform_indices = @transform_4, window_bounds = array<i64: 256, 256>}, {pipeline_mode = #tpu.pipeline_mode<synchronous>, transform_indices = @transform_5, window_bounds = array<i64: 8, 32>}, {pipeline_mode = #tpu.pipeline_mode<synchronous>, transform_indices = @transform_6, window_bounds = array<i64: 1, 32>}, {pipeline_mode = #tpu.pipeline_mode<synchronous>, transform_indices = @transform_7, window_bounds = array<i64: 32, 32>}, {pipeline_mode = #tpu.pipeline_mode<synchronous>, transform_indices = @transform_8, window_bounds = array<i64: 1, 32>}, {pipeline_mode = #tpu.pipeline_mode<synchronous>, transform_indices = @transform_9, window_bounds = array<i64: 32, 16>}, {pipeline_mode = #tpu.pipeline_mode<synchronous>, transform_indices = @transform_10, window_bounds = array<i64: 1, 16>}, {pipeline_mode = #tpu.pipeline_mode<synchronous>, transform_indices = @transform_11, window_bounds = array<i64: 16, 128>}, {pipeline_mode = #tpu.pipeline_mode<synchronous>, transform_indices = @transform_12, window_bounds = array<i64: 1, 128>}, {transform_indices = @transform_13, window_bounds = array<i64: 16, 128>}]} {
    %c0 = arith.constant 0 : index
    %c0_0 = arith.constant 0 : index
    %0 = vector.load %arg1[%c0, %c0_0] : memref<256x16xf32, #tpu.memory_space<vmem>>, vector<256x16xf32>
    %cst = arith.constant dense<0.000000e+00> : vector<256xf32>
    %1 = vector.multi_reduction <add>, %0, %cst [1] : vector<256x16xf32> to vector<256xf32>
    %2 = vector.shape_cast %1 : vector<256xf32> to vector<256x1xf32>
    %3 = tpu.reciprocal %2 : vector<256x1xf32> -> vector<256x1xf32>
    %4 = vector.broadcast %3 : vector<256x1xf32> to vector<256x16xf32>
    %5 = arith.mulf %0, %4 : vector<256x16xf32>
    %c0_1 = arith.constant 0 : index
    %c0_2 = arith.constant 0 : index
    %6 = vector.load %arg4[%c0_1, %c0_2] : memref<16x256xf32, #tpu.memory_space<vmem>>, vector<16x256xf32>
    %cst_3 = arith.constant dense<0.000000e+00> : vector<256x256xf32>
    %7 = tpu.matmul %5, %6, %cst_3 {dimension_numbers = #tpu.dot_dimension_numbers<[1], [0], [0], [1], [0, 0, 1, 1], [], []>} : vector<256x16xf32>, vector<16x256xf32>, vector<256x256xf32> -> vector<256x256xf32>
    %c0_4 = arith.constant 0 : index
    %c0_5 = arith.constant 0 : index
    %8 = vector.load %arg5[%c0_4, %c0_5] : memref<256x256xf32, #tpu.memory_space<vmem>>, vector<256x256xf32>
    %9 = arith.mulf %7, %8 : vector<256x256xf32>
    %c0_6 = arith.constant 0 : index
    %c0_7 = arith.constant 0 : index
    %10 = vector.load %arg2[%c0_6, %c0_7] : memref<256x8xf32, #tpu.memory_space<vmem>>, vector<256x8xf32>
    %c0_8 = arith.constant 0 : index
    %c0_9 = arith.constant 0 : index
    %11 = vector.load %arg6[%c0_8, %c0_9] : memref<8x32xf32, #tpu.memory_space<vmem>>, vector<8x32xf32>
    %cst_10 = arith.constant dense<0.000000e+00> : vector<256x32xf32>
    %12 = tpu.matmul %10, %11, %cst_10 {dimension_numbers = #tpu.dot_dimension_numbers<[1], [0], [0], [1], [0, 0, 1, 1], [], []>} : vector<256x8xf32>, vector<8x32xf32>, vector<256x32xf32> -> vector<256x32xf32>
    %cst_11 = arith.constant dense<0.000000e+00> : vector<256x32xf32>
    %13 = tpu.matmul %9, %12, %cst_11 {dimension_numbers = #tpu.dot_dimension_numbers<[1], [0], [0], [1], [0, 0, 1, 1], [], []>} : vector<256x256xf32>, vector<256x32xf32>, vector<256x32xf32> -> vector<256x32xf32>
    %c0_12 = arith.constant 0 : index
    %c0_13 = arith.constant 0 : index
    %14 = vector.load %arg7[%c0_12, %c0_13] : memref<1x32xf32, #tpu.memory_space<vmem>>, vector<1x32xf32>
    %15 = vector.broadcast %14 : vector<1x32xf32> to vector<256x32xf32>
    %16 = arith.addf %13, %15 : vector<256x32xf32>
    %cst_14 = arith.constant 0.000000e+00 : f32
    %17 = vector.broadcast %cst_14 : f32 to vector<256x32xf32>
    %18 = arith.maximumf %16, %17 : vector<256x32xf32>
    %c0_15 = arith.constant 0 : index
    %c0_16 = arith.constant 0 : index
    %19 = vector.load %arg8[%c0_15, %c0_16] : memref<32x32xf32, #tpu.memory_space<vmem>>, vector<32x32xf32>
    %cst_17 = arith.constant dense<0.000000e+00> : vector<256x32xf32>
    %20 = tpu.matmul %18, %19, %cst_17 {dimension_numbers = #tpu.dot_dimension_numbers<[1], [0], [0], [1], [0, 0, 1, 1], [], []>} : vector<256x32xf32>, vector<32x32xf32>, vector<256x32xf32> -> vector<256x32xf32>
    %cst_18 = arith.constant dense<0.000000e+00> : vector<256x32xf32>
    %21 = tpu.matmul %9, %20, %cst_18 {dimension_numbers = #tpu.dot_dimension_numbers<[1], [0], [0], [1], [0, 0, 1, 1], [], []>} : vector<256x256xf32>, vector<256x32xf32>, vector<256x32xf32> -> vector<256x32xf32>
    %c0_19 = arith.constant 0 : index
    %c0_20 = arith.constant 0 : index
    %22 = vector.load %arg9[%c0_19, %c0_20] : memref<1x32xf32, #tpu.memory_space<vmem>>, vector<1x32xf32>
    %23 = vector.broadcast %22 : vector<1x32xf32> to vector<256x32xf32>
    %24 = arith.addf %21, %23 : vector<256x32xf32>
    %cst_21 = arith.constant 0.000000e+00 : f32
    %25 = vector.broadcast %cst_21 : f32 to vector<256x32xf32>
    %26 = arith.maximumf %24, %25 : vector<256x32xf32>
    %c0_22 = arith.constant 0 : index
    %c0_23 = arith.constant 0 : index
    %27 = vector.load %arg3[%c0_22, %c0_23] : memref<16x256xf32, #tpu.memory_space<vmem>>, vector<16x256xf32>
    %cst_24 = arith.constant dense<0.000000e+00> : vector<16x32xf32>
    %28 = tpu.matmul %27, %26, %cst_24 {dimension_numbers = #tpu.dot_dimension_numbers<[1], [0], [0], [1], [0, 0, 1, 1], [], []>} : vector<16x256xf32>, vector<256x32xf32>, vector<16x32xf32> -> vector<16x32xf32>
    %c0_25 = arith.constant 0 : index
    %c0_26 = arith.constant 0 : index
    %29 = vector.load %arg10[%c0_25, %c0_26] : memref<32x16xf32, #tpu.memory_space<vmem>>, vector<32x16xf32>
    %cst_27 = arith.constant dense<0.000000e+00> : vector<16x16xf32>
    %30 = tpu.matmul %28, %29, %cst_27 {dimension_numbers = #tpu.dot_dimension_numbers<[1], [0], [0], [1], [0, 0, 1, 1], [], []>} : vector<16x32xf32>, vector<32x16xf32>, vector<16x16xf32> -> vector<16x16xf32>
    %c0_28 = arith.constant 0 : index
    %c0_29 = arith.constant 0 : index
    %31 = vector.load %arg11[%c0_28, %c0_29] : memref<1x16xf32, #tpu.memory_space<vmem>>, vector<1x16xf32>
    %32 = vector.broadcast %31 : vector<1x16xf32> to vector<16x16xf32>
    %33 = arith.addf %30, %32 : vector<16x16xf32>
    %cst_30 = arith.constant 0.000000e+00 : f32
    %34 = vector.broadcast %cst_30 : f32 to vector<16x16xf32>
    %35 = arith.maximumf %33, %34 : vector<16x16xf32>
    %c0_31 = arith.constant 0 : index
    %c0_32 = arith.constant 0 : index
    %36 = vector.load %arg12[%c0_31, %c0_32] : memref<16x128xf32, #tpu.memory_space<vmem>>, vector<16x128xf32>
    %cst_33 = arith.constant dense<0.000000e+00> : vector<16x128xf32>
    %37 = tpu.matmul %35, %36, %cst_33 {dimension_numbers = #tpu.dot_dimension_numbers<[1], [0], [0], [1], [0, 0, 1, 1], [], []>} : vector<16x16xf32>, vector<16x128xf32>, vector<16x128xf32> -> vector<16x128xf32>
    %c0_34 = arith.constant 0 : index
    %c0_35 = arith.constant 0 : index
    %38 = vector.load %arg13[%c0_34, %c0_35] : memref<1x128xf32, #tpu.memory_space<vmem>>, vector<1x128xf32>
    %39 = vector.broadcast %38 : vector<1x128xf32> to vector<16x128xf32>
    %40 = arith.addf %37, %39 : vector<16x128xf32>
    %cst_36 = arith.constant dense<0xFF800000> : vector<16xf32>
    %41 = vector.multi_reduction <maximumf>, %40, %cst_36 [1] : vector<16x128xf32> to vector<16xf32>
    %42 = vector.shape_cast %41 : vector<16xf32> to vector<16x1xf32>
    %43 = vector.broadcast %42 : vector<16x1xf32> to vector<16x128xf32>
    %44 = arith.subf %40, %43 : vector<16x128xf32>
    %45 = math.exp %44 : vector<16x128xf32>
    %cst_37 = arith.constant dense<0.000000e+00> : vector<16xf32>
    %46 = vector.multi_reduction <add>, %45, %cst_37 [1] : vector<16x128xf32> to vector<16xf32>
    %47 = vector.shape_cast %46 : vector<16xf32> to vector<16x1xf32>
    %48 = tpu.reciprocal %47 : vector<16x1xf32> -> vector<16x1xf32>
    %49 = vector.broadcast %48 : vector<16x1xf32> to vector<16x128xf32>
    %50 = arith.mulf %45, %49 : vector<16x128xf32>
    %c0_38 = arith.constant 0 : index
    %c0_39 = arith.constant 0 : index
    %51 = vector.load %arg14[%c0_38, %c0_39] : memref<16x128xf32, #tpu.memory_space<vmem>>, vector<16x128xf32>
    tpu.vector_store %arg14[%c0_38, %c0_39], %50 {strides = array<i32>} : memref<16x128xf32, #tpu.memory_space<vmem>>, vector<16x128xf32>,
    return
  }
  func.func @transform_0(%arg0: i32) -> (i32, i32) {
    %c0_i32 = arith.constant 0 : i32
    %c0_i32_0 = arith.constant 0 : i32
    return %arg0, %c0_i32 : i32, i32
  }
  func.func @transform_1(%arg0: i32) -> (i32, i32) {
    %c0_i32 = arith.constant 0 : i32
    %c0_i32_0 = arith.constant 0 : i32
    return %arg0, %c0_i32 : i32, i32
  }
  func.func @transform_2(%arg0: i32) -> (i32, i32) {
    %c0_i32 = arith.constant 0 : i32
    %c0_i32_0 = arith.constant 0 : i32
    return %arg0, %c0_i32 : i32, i32
  }
  func.func @transform_3(%arg0: i32) -> (i32, i32) {
    %c0_i32 = arith.constant 0 : i32
    %c0_i32_0 = arith.constant 0 : i32
    %c0_i32_1 = arith.constant 0 : i32
    return %c0_i32, %c0_i32_0 : i32, i32
  }
  func.func @transform_4(%arg0: i32) -> (i32, i32) {
    %c0_i32 = arith.constant 0 : i32
    %c0_i32_0 = arith.constant 0 : i32
    %c0_i32_1 = arith.constant 0 : i32
    return %c0_i32, %c0_i32_0 : i32, i32
  }
  func.func @transform_5(%arg0: i32) -> (i32, i32) {
    %c0_i32 = arith.constant 0 : i32
    %c0_i32_0 = arith.constant 0 : i32
    %c0_i32_1 = arith.constant 0 : i32
    return %c0_i32, %c0_i32_0 : i32, i32
  }
  func.func @transform_6(%arg0: i32) -> (i32, i32) {
    %c0_i32 = arith.constant 0 : i32
    %c0_i32_0 = arith.constant 0 : i32
    %c0_i32_1 = arith.constant 0 : i32
    return %c0_i32, %c0_i32_0 : i32, i32
  }
  func.func @transform_7(%arg0: i32) -> (i32, i32) {
    %c0_i32 = arith.constant 0 : i32
    %c0_i32_0 = arith.constant 0 : i32
    %c0_i32_1 = arith.constant 0 : i32
    return %c0_i32, %c0_i32_0 : i32, i32
  }
  func.func @transform_8(%arg0: i32) -> (i32, i32) {
    %c0_i32 = arith.constant 0 : i32
    %c0_i32_0 = arith.constant 0 : i32
    %c0_i32_1 = arith.constant 0 : i32
    return %c0_i32, %c0_i32_0 : i32, i32
  }
  func.func @transform_9(%arg0: i32) -> (i32, i32) {
    %c0_i32 = arith.constant 0 : i32
    %c0_i32_0 = arith.constant 0 : i32
    %c0_i32_1 = arith.constant 0 : i32
    return %c0_i32, %c0_i32_0 : i32, i32
  }
  func.func @transform_10(%arg0: i32) -> (i32, i32) {
    %c0_i32 = arith.constant 0 : i32
    %c0_i32_0 = arith.constant 0 : i32
    %c0_i32_1 = arith.constant 0 : i32
    return %c0_i32, %c0_i32_0 : i32, i32
  }
  func.func @transform_11(%arg0: i32) -> (i32, i32) {
    %c0_i32 = arith.constant 0 : i32
    %c0_i32_0 = arith.constant 0 : i32
    %c0_i32_1 = arith.constant 0 : i32
    return %c0_i32, %c0_i32_0 : i32, i32
  }
  func.func @transform_12(%arg0: i32) -> (i32, i32) {
    %c0_i32 = arith.constant 0 : i32
    %c0_i32_0 = arith.constant 0 : i32
    %c0_i32_1 = arith.constant 0 : i32
    return %c0_i32, %c0_i32_0 : i32, i32
  }
  func.func @transform_13(%arg0: i32) -> (i32, i32) {
    %c0_i32 = arith.constant 0 : i32
    %c0_i32_0 = arith.constant 0 : i32
    return %arg0, %c0_i32 : i32, i32
  }
}

</mosaic_0001>

<llo_original>
// kernel: tpu_custom_call.1
$region0: #{tpu_custom_call.1}
  #allocation0 [shape = 'u32[]', space=smem, size = 0x4, offset = 0x4, fixed_abs, tag = 'smem constant byte address 0x4 - core index']
  #allocation1 [shape = 'u32[72,128]{1,0:T(1,128)}', space=vmem, size = 0x9000, scoped, tag = 'internal scratch']
  %s0 = inlined_call_operand.vmem [shape: f32[512,16], index: 0, kind: input, shape index: {}]
  %s1 = inlined_call_operand.vmem [shape: f32[512,8], index: 1, kind: input, shape index: {}]
  %s2 = inlined_call_operand.vmem [shape: f32[32,256], index: 2, kind: input, shape index: {}]
  %s3 = inlined_call_operand.vmem [shape: f32[16,256], index: 3, kind: input, shape index: {}]
  %s4 = inlined_call_operand.vmem [shape: f32[256,256], index: 4, kind: input, shape index: {}]
  %s5 = inlined_call_operand.vmem [shape: f32[8,32], index: 5, kind: input, shape index: {}]
  %s6 = inlined_call_operand.vmem [shape: f32[1,32], index: 6, kind: input, shape index: {}]
  %s7 = inlined_call_operand.vmem [shape: f32[32,32], index: 7, kind: input, shape index: {}]
  %s8 = inlined_call_operand.vmem [shape: f32[1,32], index: 8, kind: input, shape index: {}]
  %s9 = inlined_call_operand.vmem [shape: f32[32,16], index: 9, kind: input, shape index: {}]
  %s10 = inlined_call_operand.vmem [shape: f32[1,16], index: 10, kind: input, shape index: {}]
  %s11 = inlined_call_operand.vmem [shape: f32[16,128], index: 11, kind: input, shape index: {}]
  %s12 = inlined_call_operand.vmem [shape: f32[1,128], index: 12, kind: input, shape index: {}]
  %s13 = inlined_call_operand.hbm [shape: f32[32,128], index: 13, kind: output, shape index: {}]
  %s14 = sld [smem:[#allocation0]]
  $region85: #{tpu_custom_call.1} parent=0
    _
  %s16 = ssub.s32 1, %s14
  %s17 = scalar_select 0, %s16, %s14
  $region1: #{tpu_custom_call.1} parent=0
    #allocation2 [shape = 'u8[16384]{0}', space=vmem, size = 0x4000, scoped, tag = 'output window, operand 0']
    #allocation3 [shape = 's32[2]{0}', space=sflag, size = 0x8, scoped, tag = 'scoped memory for tpu_custom_call.1']
    %18 = vsyncpa [#allocation3], 0
    %s19 = scalar_lea.sflag [#allocation3], 1
    %20 = vsyncpa %s19, 0
    loop: start=0, step=1, limit=4
    $region2: #{tpu_custom_call.1} parent=1 // loop_pre_header
      _
    $region3: #{tpu_custom_call.1} parent=1 // loop_header
      %s22 = sphi 0, %s26
      %p23 = scmp.ge.s32.totalorder %s22, 4
      %s32 = sphi 0, %s34
      %s35 = sphi 0, %s32
      %s36 = sphi 0, %s35
      %s52 = sphi 0, %s36
      %s58 = sphi 0, %s60
      %s61 = sphi 0, %s58
      %s62 = sphi 0, %s61
      %s78 = sphi 0, %s62
      %s84 = sphi 0, %s86
      %s87 = sphi 0, %s84
      %s88 = sphi 0, %s87
      %s104 = sphi 0, %s88
      %s108 = sphi 0, %s108
      %s110 = sphi 0, %s108
      %s111 = sphi 0, %s110
      %s125 = sphi 0, %s111
      %s129 = sphi 0, %s129
      %s131 = sphi 0, %s129
      %s132 = sphi 0, %s131
      %s146 = sphi 0, %s132
      %s150 = sphi 0, %s150
      %s152 = sphi 0, %s150
      %s153 = sphi 0, %s152
      %s167 = sphi 0, %s153
      %s171 = sphi 0, %s171
      %s173 = sphi 0, %s171
      %s174 = sphi 0, %s173
      %s188 = sphi 0, %s174
      %s192 = sphi 0, %s192
      %s194 = sphi 0, %s192
      %s195 = sphi 0, %s194
      %s209 = sphi 0, %s195
      %s213 = sphi 0, %s213
      %s215 = sphi 0, %s213
      %s216 = sphi 0, %s215
      %s230 = sphi 0, %s216
      %s234 = sphi 0, %s234
      %s236 = sphi 0, %s234
      %s237 = sphi 0, %s236
      %s251 = sphi 0, %s237
      %s255 = sphi 0, %s255
      %s257 = sphi 0, %s255
      %s258 = sphi 0, %s257
      %s272 = sphi 0, %s258
      %s276 = sphi 0, %s276
      %s278 = sphi 0, %s276
      %s279 = sphi 0, %s278
      %s293 = sphi 0, %s279
      %s297 = sphi 0, %s297
      %s299 = sphi 0, %s297
      %s300 = sphi 0, %s299
      %s314 = sphi 0, %s300
      %s320 = sphi 0, %s322
      %s323 = sphi 0, %s320
      %s324 = sphi 0, %s323
      %s340 = sphi 0, %s324
    $region4: #{tpu_custom_call.1} parent=1 // loop_header_branch
      %25 = sbr.rel (%p23) target = $region8
    $region5: #{tpu_custom_call.1} parent=1 // loop_body
      %s27 = ssub.s32 %s22, 1
      %s28 = ssub.s32 %s22, 2
      %s29 = sadd.s32 %s22, 1
      %s30 = ssub.s32 %s22, %s29
      %p31 = scmp.eq.s32.totalorder %s30, 0
      %s33 = sadd.s32 %s32, 1
      %s34 = scalar_select %p31, %s32, %s33
      %p37 = pneg %p31
      %p38 = scmp.eq.s32.totalorder %s22, 1
      %p39 = por %p37, %p38
      %p40 = scmp.ne.s32.totalorder %s32, %s35
      %p41 = scmp.eq.s32.totalorder %s22, 0
      %p42 = por %p40, %p41
      %p43 = scmp.ne.s32.totalorder %s32, %s35
      %p44 = scmp.eq.s32.totalorder %s27, 1
      %p45 = por %p43, %p44
      %p46 = scmp.ne.s32.totalorder %s35, %s36
      %p47 = scmp.eq.s32.totalorder %s27, 0
      %p48 = por %p46, %p47
      %p49 = scmp.ne.s32.totalorder %s35, %s36
      %p50 = scmp.eq.s32.totalorder %s28, 1
      %p51 = por %p49, %p50
      %p53 = scmp.ne.s32.totalorder %s36, %s52
      %p54 = scmp.eq.s32.totalorder %s28, 0
      %p55 = por %p53, %p54
      %s56 = ssub.s32 %s22, %s29
      %p57 = scmp.eq.s32.totalorder %s56, 0
      %s59 = sadd.s32 %s58, 1
      %s60 = scalar_select %p57, %s58, %s59
      %p63 = pneg %p57
      %p64 = scmp.eq.s32.totalorder %s22, 1
      %p65 = por %p63, %p64
      %p66 = scmp.ne.s32.totalorder %s58, %s61
      %p67 = scmp.eq.s32.totalorder %s22, 0
      %p68 = por %p66, %p67
      %p69 = scmp.ne.s32.totalorder %s58, %s61
      %p70 = scmp.eq.s32.totalorder %s27, 1
      %p71 = por %p69, %p70
      %p72 = scmp.ne.s32.totalorder %s61, %s62
      %p73 = scmp.eq.s32.totalorder %s27, 0
      %p74 = por %p72, %p73
      %p75 = scmp.ne.s32.totalorder %s61, %s62
      %p76 = scmp.eq.s32.totalorder %s28, 1
      %p77 = por %p75, %p76
      %p79 = scmp.ne.s32.totalorder %s62, %s78
      %p80 = scmp.eq.s32.totalorder %s28, 0
      %p81 = por %p79, %p80
      %s82 = ssub.s32 %s22, %s29
      %p83 = scmp.eq.s32.totalorder %s82, 0
      %s85 = sadd.s32 %s84, 1
      %s86 = scalar_select %p83, %s84, %s85
      %p89 = pneg %p83
      %p90 = scmp.eq.s32.totalorder %s22, 1
      %p91 = por %p89, %p90
      %p92 = scmp.ne.s32.totalorder %s84, %s87
      %p93 = scmp.eq.s32.totalorder %s22, 0
      %p94 = por %p92, %p93
      %p95 = scmp.ne.s32.totalorder %s84, %s87
      %p96 = scmp.eq.s32.totalorder %s27, 1
      %p97 = por %p95, %p96
      %p98 = scmp.ne.s32.totalorder %s87, %s88
      %p99 = scmp.eq.s32.totalorder %s27, 0
      %p100 = por %p98, %p99
      %p101 = scmp.ne.s32.totalorder %s87, %s88
      %p102 = scmp.eq.s32.totalorder %s28, 1
      %p103 = por %p101, %p102
      %p105 = scmp.ne.s32.totalorder %s88, %s104
      %p106 = scmp.eq.s32.totalorder %s28, 0
      %p107 = por %p105, %p106
      %s109 = sadd.s32 %s108, 1
      %p112 = scmp.eq.s32.totalorder %s22, 1
      %p113 = scmp.ne.s32.totalorder %s108, %s110
      %p114 = scmp.eq.s32.totalorder %s22, 0
      %p115 = por %p113, %p114
      %p116 = scmp.ne.s32.totalorder %s108, %s110
      %p117 = scmp.eq.s32.totalorder %s27, 1
      %p118 = por %p116, %p117
      %p119 = scmp.ne.s32.totalorder %s110, %s111
      %p120 = scmp.eq.s32.totalorder %s27, 0
      %p121 = por %p119, %p120
      %p122 = scmp.ne.s32.totalorder %s110, %s111
      %p123 = scmp.eq.s32.totalorder %s28, 1
      %p124 = por %p122, %p123
      %p126 = scmp.ne.s32.totalorder %s111, %s125
      %p127 = scmp.eq.s32.totalorder %s28, 0
      %p128 = por %p126, %p127
      %s130 = sadd.s32 %s129, 1
      %p133 = scmp.eq.s32.totalorder %s22, 1
      %p134 = scmp.ne.s32.totalorder %s129, %s131
      %p135 = scmp.eq.s32.totalorder %s22, 0
      %p136 = por %p134, %p135
      %p137 = scmp.ne.s32.totalorder %s129, %s131
      %p138 = scmp.eq.s32.totalorder %s27, 1
      %p139 = por %p137, %p138
      %p140 = scmp.ne.s32.totalorder %s131, %s132
      %p141 = scmp.eq.s32.totalorder %s27, 0
      %p142 = por %p140, %p141
      %p143 = scmp.ne.s32.totalorder %s131, %s132
      %p144 = scmp.eq.s32.totalorder %s28, 1
      %p145 = por %p143, %p144
      %p147 = scmp.ne.s32.totalorder %s132, %s146
      %p148 = scmp.eq.s32.totalorder %s28, 0
      %p149 = por %p147, %p148
      %s151 = sadd.s32 %s150, 1
      %p154 = scmp.eq.s32.totalorder %s22, 1
      %p155 = scmp.ne.s32.totalorder %s150, %s152
      %p156 = scmp.eq.s32.totalorder %s22, 0
      %p157 = por %p155, %p156
      %p158 = scmp.ne.s32.totalorder %s150, %s152
      %p159 = scmp.eq.s32.totalorder %s27, 1
      %p160 = por %p158, %p159
      %p161 = scmp.ne.s32.totalorder %s152, %s153
      %p162 = scmp.eq.s32.totalorder %s27, 0
      %p163 = por %p161, %p162
      %p164 = scmp.ne.s32.totalorder %s152, %s153
      %p165 = scmp.eq.s32.totalorder %s28, 1
      %p166 = por %p164, %p165
      %p168 = scmp.ne.s32.totalorder %s153, %s167
      %p169 = scmp.eq.s32.totalorder %s28, 0
      %p170 = por %p168, %p169
      %s172 = sadd.s32 %s171, 1
      %p175 = scmp.eq.s32.totalorder %s22, 1
      %p176 = scmp.ne.s32.totalorder %s171, %s173
      %p177 = scmp.eq.s32.totalorder %s22, 0
      %p178 = por %p176, %p177
      %p179 = scmp.ne.s32.totalorder %s171, %s173
      %p180 = scmp.eq.s32.totalorder %s27, 1
      %p181 = por %p179, %p180
      %p182 = scmp.ne.s32.totalorder %s173, %s174
      %p183 = scmp.eq.s32.totalorder %s27, 0
      %p184 = por %p182, %p183
      %p185 = scmp.ne.s32.totalorder %s173, %s174
      %p186 = scmp.eq.s32.totalorder %s28, 1
      %p187 = por %p185, %p186
      %p189 = scmp.ne.s32.totalorder %s174, %s188
      %p190 = scmp.eq.s32.totalorder %s28, 0
      %p191 = por %p189, %p190
      %s193 = sadd.s32 %s192, 1
      %p196 = scmp.eq.s32.totalorder %s22, 1
      %p197 = scmp.ne.s32.totalorder %s192, %s194
      %p198 = scmp.eq.s32.totalorder %s22, 0
      %p199 = por %p197, %p198
      %p200 = scmp.ne.s32.totalorder %s192, %s194
      %p201 = scmp.eq.s32.totalorder %s27, 1
      %p202 = por %p200, %p201
      %p203 = scmp.ne.s32.totalorder %s194, %s195
      %p204 = scmp.eq.s32.totalorder %s27, 0
      %p205 = por %p203, %p204
      %p206 = scmp.ne.s32.totalorder %s194, %s195
      %p207 = scmp.eq.s32.totalorder %s28, 1
      %p208 = por %p206, %p207
      %p210 = scmp.ne.s32.totalorder %s195, %s209
      %p211 = scmp.eq.s32.totalorder %s28, 0
      %p212 = por %p210, %p211
      %s214 = sadd.s32 %s213, 1
      %p217 = scmp.eq.s32.totalorder %s22, 1
      %p218 = scmp.ne.s32.totalorder %s213, %s215
      %p219 = scmp.eq.s32.totalorder %s22, 0
      %p220 = por %p218, %p219
      %p221 = scmp.ne.s32.totalorder %s213, %s215
      %p222 = scmp.eq.s32.totalorder %s27, 1
      %p223 = por %p221, %p222
      %p224 = scmp.ne.s32.totalorder %s215, %s216
      %p225 = scmp.eq.s32.totalorder %s27, 0
      %p226 = por %p224, %p225
      %p227 = scmp.ne.s32.totalorder %s215, %s216
      %p228 = scmp.eq.s32.totalorder %s28, 1
      %p229 = por %p227, %p228
      %p231 = scmp.ne.s32.totalorder %s216, %s230
      %p232 = scmp.eq.s32.totalorder %s28, 0
      %p233 = por %p231, %p232
      %s235 = sadd.s32 %s234, 1
      %p238 = scmp.eq.s32.totalorder %s22, 1
      %p239 = scmp.ne.s32.totalorder %s234, %s236
      %p240 = scmp.eq.s32.totalorder %s22, 0
      %p241 = por %p239, %p240
      %p242 = scmp.ne.s32.totalorder %s234, %s236
      %p243 = scmp.eq.s32.totalorder %s27, 1
      %p244 = por %p242, %p243
      %p245 = scmp.ne.s32.totalorder %s236, %s237
      %p246 = scmp.eq.s32.totalorder %s27, 0
      %p247 = por %p245, %p246
      %p248 = scmp.ne.s32.totalorder %s236, %s237
      %p249 = scmp.eq.s32.totalorder %s28, 1
      %p250 = por %p248, %p249
      %p252 = scmp.ne.s32.totalorder %s237, %s251
      %p253 = scmp.eq.s32.totalorder %s28, 0
      %p254 = por %p252, %p253
      %s256 = sadd.s32 %s255, 1
      %p259 = scmp.eq.s32.totalorder %s22, 1
      %p260 = scmp.ne.s32.totalorder %s255, %s257
      %p261 = scmp.eq.s32.totalorder %s22, 0
      %p262 = por %p260, %p261
      %p263 = scmp.ne.s32.totalorder %s255, %s257
      %p264 = scmp.eq.s32.totalorder %s27, 1
      %p265 = por %p263, %p264
      %p266 = scmp.ne.s32.totalorder %s257, %s258
      %p267 = scmp.eq.s32.totalorder %s27, 0
      %p268 = por %p266, %p267
      %p269 = scmp.ne.s32.totalorder %s257, %s258
      %p270 = scmp.eq.s32.totalorder %s28, 1
      %p271 = por %p269, %p270
      %p273 = scmp.ne.s32.totalorder %s258, %s272
      %p274 = scmp.eq.s32.totalorder %s28, 0
      %p275 = por %p273, %p274
      %s277 = sadd.s32 %s276, 1
      %p280 = scmp.eq.s32.totalorder %s22, 1
      %p281 = scmp.ne.s32.totalorder %s276, %s278
      %p282 = scmp.eq.s32.totalorder %s22, 0
      %p283 = por %p281, %p282
      %p284 = scmp.ne.s32.totalorder %s276, %s278
      %p285 = scmp.eq.s32.totalorder %s27, 1
      %p286 = por %p284, %p285
      %p287 = scmp.ne.s32.totalorder %s278, %s279
      %p288 = scmp.eq.s32.totalorder %s27, 0
      %p289 = por %p287, %p288
      %p290 = scmp.ne.s32.totalorder %s278, %s279
      %p291 = scmp.eq.s32.totalorder %s28, 1
      %p292 = por %p290, %p291
      %p294 = scmp.ne.s32.totalorder %s279, %s293
      %p295 = scmp.eq.s32.totalorder %s28, 0
      %p296 = por %p294, %p295
      %s298 = sadd.s32 %s297, 1
      %p301 = scmp.eq.s32.totalorder %s22, 1
      %p302 = scmp.ne.s32.totalorder %s297, %s299
      %p303 = scmp.eq.s32.totalorder %s22, 0
      %p304 = por %p302, %p303
      %p305 = scmp.ne.s32.totalorder %s297, %s299
      %p306 = scmp.eq.s32.totalorder %s27, 1
      %p307 = por %p305, %p306
      %p308 = scmp.ne.s32.totalorder %s299, %s300
      %p309 = scmp.eq.s32.totalorder %s27, 0
      %p310 = por %p308, %p309
      %p311 = scmp.ne.s32.totalorder %s299, %s300
      %p312 = scmp.eq.s32.totalorder %s28, 1
      %p313 = por %p311, %p312
      %p315 = scmp.ne.s32.totalorder %s300, %s314
      %p316 = scmp.eq.s32.totalorder %s28, 0
      %p317 = por %p315, %p316
      %s318 = ssub.s32 %s22, %s29
      %p319 = scmp.eq.s32.totalorder %s318, 0
      %s321 = sadd.s32 %s320, 1
      %s322 = scalar_select %p319, %s320, %s321
      %p325 = pneg %p319
      %p326 = scmp.eq.s32.totalorder %s22, 1
      %p327 = por %p325, %p326
      %p328 = scmp.ne.s32.totalorder %s320, %s323
      %p329 = scmp.eq.s32.totalorder %s22, 0
      %p330 = por %p328, %p329
      %p331 = scmp.ne.s32.totalorder %s320, %s323
      %p332 = scmp.eq.s32.totalorder %s27, 1
      %p333 = por %p331, %p332
      %p334 = scmp.ne.s32.totalorder %s323, %s324
      %p335 = scmp.eq.s32.totalorder %s27, 0
      %p336 = por %p334, %p335
      %p337 = scmp.ne.s32.totalorder %s323, %s324
      %p338 = scmp.eq.s32.totalorder %s28, 1
      %p339 = por %p337, %p338
      %p341 = scmp.ne.s32.totalorder %s324, %s340
      %p342 = scmp.eq.s32.totalorder %s28, 0
      %p343 = por %p341, %p342
      %p344 = scmp.le.s32.totalorder 1, %s22
      %p345 = scmp.lt.s32.totalorder %s22, 3
      %p346 = pnand %p344, %p345
      %p347 = pneg %p346
      // Predicated region
      $region9: #{tpu_custom_call.1} parent=5 // pred_check
        _
      $region10: #{tpu_custom_call.1} parent=5 // pred_check_branch
        %349 = sbr.rel (%p346) target = $region12
      $region11: #{tpu_custom_call.1} parent=5 // pred_region
        %s350 = ssub.s32 %s22, 1
        // Predicated region
        $region13: #{tpu_custom_call.1} parent=11 // pred_check
          %p351 = pneg %p121
        $region14: #{tpu_custom_call.1} parent=11 // pred_check_branch
          %353 = sbr.rel (%p351) target = $region16
        $region15: #{tpu_custom_call.1} parent=11 // pred_region
          _
        $region16: #{tpu_custom_call.1} parent=11 // pred_fallthru
          _
        // Predicated region
        $region17: #{tpu_custom_call.1} parent=11 // pred_check
          %p354 = pneg %p142
        $region18: #{tpu_custom_call.1} parent=11 // pred_check_branch
          %356 = sbr.rel (%p354) target = $region20
        $region19: #{tpu_custom_call.1} parent=11 // pred_region
          _
        $region20: #{tpu_custom_call.1} parent=11 // pred_fallthru
          _
        // Predicated region
        $region21: #{tpu_custom_call.1} parent=11 // pred_check
          %p357 = pneg %p163
        $region22: #{tpu_custom_call.1} parent=11 // pred_check_branch
          %359 = sbr.rel (%p357) target = $region24
        $region23: #{tpu_custom_call.1} parent=11 // pred_region
          _
        $region24: #{tpu_custom_call.1} parent=11 // pred_fallthru
          _
        // Predicated region
        $region25: #{tpu_custom_call.1} parent=11 // pred_check
          %p360 = pneg %p184
        $region26: #{tpu_custom_call.1} parent=11 // pred_check_branch
          %362 = sbr.rel (%p360) target = $region28
        $region27: #{tpu_custom_call.1} parent=11 // pred_region
          _
        $region28: #{tpu_custom_call.1} parent=11 // pred_fallthru
          _
        // Predicated region
        $region29: #{tpu_custom_call.1} parent=11 // pred_check
          %p363 = pneg %p205
        $region30: #{tpu_custom_call.1} parent=11 // pred_check_branch
          %365 = sbr.rel (%p363) target = $region32
        $region31: #{tpu_custom_call.1} parent=11 // pred_region
          _
        $region32: #{tpu_custom_call.1} parent=11 // pred_fallthru
          _
        // Predicated region
        $region33: #{tpu_custom_call.1} parent=11 // pred_check
          %p366 = pneg %p226
        $region34: #{tpu_custom_call.1} parent=11 // pred_check_branch
          %368 = sbr.rel (%p366) target = $region36
        $region35: #{tpu_custom_call.1} parent=11 // pred_region
          _
        $region36: #{tpu_custom_call.1} parent=11 // pred_fallthru
          _
        // Predicated region
        $region37: #{tpu_custom_call.1} parent=11 // pred_check
          %p369 = pneg %p247
        $region38: #{tpu_custom_call.1} parent=11 // pred_check_branch
          %371 = sbr.rel (%p369) target = $region40
        $region39: #{tpu_custom_call.1} parent=11 // pred_region
          _
        $region40: #{tpu_custom_call.1} parent=11 // pred_fallthru
          _
        // Predicated region
        $region41: #{tpu_custom_call.1} parent=11 // pred_check
          %p372 = pneg %p268
        $region42: #{tpu_custom_call.1} parent=11 // pred_check_branch
          %374 = sbr.rel (%p372) target = $region44
        $region43: #{tpu_custom_call.1} parent=11 // pred_region
          _
        $region44: #{tpu_custom_call.1} parent=11 // pred_fallthru
          _
        // Predicated region
        $region45: #{tpu_custom_call.1} parent=11 // pred_check
          %p375 = pneg %p289
        $region46: #{tpu_custom_call.1} parent=11 // pred_check_branch
          %377 = sbr.rel (%p375) target = $region48
        $region47: #{tpu_custom_call.1} parent=11 // pred_region
          _
        $region48: #{tpu_custom_call.1} parent=11 // pred_fallthru
          _
        // Predicated region
        $region49: #{tpu_custom_call.1} parent=11 // pred_check
          %p378 = pneg %p310
        $region50: #{tpu_custom_call.1} parent=11 // pred_check_branch
          %380 = sbr.rel (%p378) target = $region52
        $region51: #{tpu_custom_call.1} parent=11 // pred_region
          _
        $region52: #{tpu_custom_call.1} parent=11 // pred_fallthru
          _
      $region12: #{tpu_custom_call.1} parent=5 // pred_fallthru
        _
      %p381 = scmp.lt.s32.totalorder %s22, 2
      // Predicated region
      $region53: #{tpu_custom_call.1} parent=5 // pred_check
        %p382 = pneg %p381
      $region54: #{tpu_custom_call.1} parent=5 // pred_check_branch
        %384 = sbr.rel (%p382) target = $region56
      $region55: #{tpu_custom_call.1} parent=5 // pred_region
        // Predicated region
        $region57: #{tpu_custom_call.1} parent=55 // pred_check
          %p385 = pneg %p42
        $region58: #{tpu_custom_call.1} parent=55 // pred_check_branch
          %387 = sbr.rel (%p385) target = $region60
        $region59: #{tpu_custom_call.1} parent=55 // pred_region
          %s388 = smul.u32 32, %s22
          %p389 = scmp.lt.s32.totalorder %s388, 63
          %s390 = scalar_select %p389, %s388, 63
          %s391 = smul.addr %s390, 8
          %s392 = scalar_lea.vmem %s0, %s391
          %s393 = smul.u32 32, %s22
        $region60: #{tpu_custom_call.1} parent=55 // pred_fallthru
          _
        // Predicated region
        $region61: #{tpu_custom_call.1} parent=55 // pred_check
          %p394 = pneg %p68
        $region62: #{tpu_custom_call.1} parent=55 // pred_check_branch
          %396 = sbr.rel (%p394) target = $region64
        $region63: #{tpu_custom_call.1} parent=55 // pred_region
          %s397 = smul.u32 32, %s22
          %p398 = scmp.lt.s32.totalorder %s397, 63
          %s399 = scalar_select %p398, %s397, 63
          %s400 = smul.addr %s399, 8
          %s401 = scalar_lea.vmem %s1, %s400
          %s402 = smul.u32 32, %s22
        $region64: #{tpu_custom_call.1} parent=55 // pred_fallthru
          _
        // Predicated region
        $region65: #{tpu_custom_call.1} parent=55 // pred_check
          %p403 = pneg %p94
        $region66: #{tpu_custom_call.1} parent=55 // pred_check_branch
          %405 = sbr.rel (%p403) target = $region68
        $region67: #{tpu_custom_call.1} parent=55 // pred_region
          %s406 = smul.u32 2, %s22
          %p407 = scmp.lt.s32.totalorder %s406, 3
          %s408 = scalar_select %p407, %s406, 3
          %s409 = smul.addr %s408, 2
          %s410 = smul.addr %s409, 8
          %s411 = scalar_lea.vmem %s2, %s410
          %s412 = smul.u32 2, %s22
        $region68: #{tpu_custom_call.1} parent=55 // pred_fallthru
          _
      $region56: #{tpu_custom_call.1} parent=5 // pred_fallthru
        _
      %p413 = scmp.le.s32.totalorder 1, %s22
      %p414 = scmp.lt.s32.totalorder %s22, 3
      %p415 = pnand %p413, %p414
      %p416 = pneg %p415
      // Predicated region
      $region69: #{tpu_custom_call.1} parent=5 // pred_check
        _
      $region70: #{tpu_custom_call.1} parent=5 // pred_check_branch
        %418 = sbr.rel (%p415) target = $region72
      $region71: #{tpu_custom_call.1} parent=5 // pred_region
        %s419 = ssub.s32 %s22, 1
        %s420 = smul.u32 32, %s27
        %p421 = scmp.lt.s32.totalorder %s420, 63
        %s422 = scalar_select %p421, %s420, 63
        %s423 = smul.addr %s422, 8
        %s424 = scalar_lea.vmem %s0, %s423
        %p425 = pneg %p48
        %p426 = pneg %p45
        %s427 = smul.u32 32, %s27
        %p428 = scmp.lt.s32.totalorder %s427, 63
        %s429 = scalar_select %p428, %s427, 63
        %s430 = smul.addr %s429, 8
        %s431 = scalar_lea.vmem %s1, %s430
        %p432 = pneg %p74
        %p433 = pneg %p71
        %s434 = smul.u32 2, %s27
        %p435 = scmp.lt.s32.totalorder %s434, 3
        %s436 = scalar_select %p435, %s434, 3
        %s437 = smul.addr %s436, 2
        %s438 = smul.addr %s437, 8
        %s439 = scalar_lea.vmem %s2, %s438
        %p440 = pneg %p100
        %p441 = pneg %p97
        %p442 = pneg %p121
        %p443 = pneg %p118
        %p444 = pneg %p142
        %p445 = pneg %p139
        %p446 = pneg %p163
        %p447 = pneg %p160
        %p448 = pneg %p184
        %p449 = pneg %p181
        %p450 = pneg %p205
        %p451 = pneg %p202
        %p452 = pneg %p226
        %p453 = pneg %p223
        %p454 = pneg %p247
        %p455 = pneg %p244
        %p456 = pneg %p268
        %p457 = pneg %p265
        %p458 = pneg %p289
        %p459 = pneg %p286
        %p460 = pneg %p310
        %p461 = pneg %p307
        %p462 = pneg %p336
        %p463 = pneg %p333
        %s464 = sand.u32 %s323, 1
        %s465 = scalar_lea.sflag [#allocation3], %s464
        %s466 = sand.u32 %s323, 1
        %s467 = smul.addr %s466, 16
        %s468 = scalar_lea.vmem [#allocation2], %s467
        %s469 = smul.u32 32, %s27
        %p470 = scmp.lt.s32.totalorder %s469, 63
        %s471 = scalar_select %p470, %s469, 63
        %s472 = smul.addr %s471, 8
        %s473 = scalar_lea.vmem %s0, %s472
        %s474 = smul.u32 32, %s27
        %s475 = smul.u32 32, %s27
        %p476 = scmp.lt.s32.totalorder %s475, 63
        %s477 = scalar_select %p476, %s475, 63
        %s478 = smul.addr %s477, 8
        %s479 = scalar_lea.vmem %s1, %s478
        %s480 = smul.u32 32, %s27
        %s481 = smul.u32 2, %s27
        %p482 = scmp.lt.s32.totalorder %s481, 3
        %s483 = scalar_select %p482, %s481, 3
        %s484 = smul.addr %s483, 2
        %s485 = smul.addr %s484, 8
        %s486 = scalar_lea.vmem %s2, %s485
        %s487 = smul.u32 2, %s27
        %s488 = smul.u32 2, %s27
        %v489 = vld [vmem:[%s473] sm:$0xff]
        %v490 = vld [vmem:[%s473 + $0x8] sm:$0xff]
        %v491 = vld [vmem:[%s473 + $0x10] sm:$0xff]
        %v492 = vld [vmem:[%s473 + $0x18] sm:$0xff]
        %v493 = vld [vmem:[%s473 + $0x20] sm:$0xff]
        %v494 = vld [vmem:[%s473 + $0x28] sm:$0xff]
        %v495 = vld [vmem:[%s473 + $0x30] sm:$0xff]
        %v496 = vld [vmem:[%s473 + $0x38] sm:$0xff]
        %v497 = vld [vmem:[%s473 + $0x40] sm:$0xff]
        %v498 = vld [vmem:[%s473 + $0x48] sm:$0xff]
        %v499 = vld [vmem:[%s473 + $0x50] sm:$0xff]
        %v500 = vld [vmem:[%s473 + $0x58] sm:$0xff]
        %v501 = vld [vmem:[%s473 + $0x60] sm:$0xff]
        %v502 = vld [vmem:[%s473 + $0x68] sm:$0xff]
        %v503 = vld [vmem:[%s473 + $0x70] sm:$0xff]
        %v504 = vld [vmem:[%s473 + $0x78] sm:$0xff]
        %v505 = vld [vmem:[%s473 + $0x80] sm:$0xff]
        %v506 = vld [vmem:[%s473 + $0x88] sm:$0xff]
        %v507 = vld [vmem:[%s473 + $0x90] sm:$0xff]
        %v508 = vld [vmem:[%s473 + $0x98] sm:$0xff]
        %v509 = vld [vmem:[%s473 + $0xa0] sm:$0xff]
        %v510 = vld [vmem:[%s473 + $0xa8] sm:$0xff]
        %v511 = vld [vmem:[%s473 + $0xb0] sm:$0xff]
        %v512 = vld [vmem:[%s473 + $0xb8] sm:$0xff]
        %v513 = vld [vmem:[%s473 + $0xc0] sm:$0xff]
        %v514 = vld [vmem:[%s473 + $0xc8] sm:$0xff]
        %v515 = vld [vmem:[%s473 + $0xd0] sm:$0xff]
        %v516 = vld [vmem:[%s473 + $0xd8] sm:$0xff]
        %v517 = vld [vmem:[%s473 + $0xe0] sm:$0xff]
        %v518 = vld [vmem:[%s473 + $0xe8] sm:$0xff]
        %v519 = vld [vmem:[%s473 + $0xf0] sm:$0xff]
        %v520 = vld [vmem:[%s473 + $0xf8] sm:$0xff]
        %vm521 = vcmask 130048
        %v522 = vsel %vm521, %v489, 0.0
        %523 = vadd.xlane.f32.xlu0 %v522
        %v524 = vpop.xlane.xlu0 %523
        %v525 = vsel %vm521, %v490, 0.0
        %526 = vadd.xlane.f32.xlu0 %v525
        %v527 = vpop.xlane.xlu0 %526
        %v528 = vsel %vm521, %v491, 0.0
        %529 = vadd.xlane.f32.xlu0 %v528
        %v530 = vpop.xlane.xlu0 %529
        %v531 = vsel %vm521, %v492, 0.0
        %532 = vadd.xlane.f32.xlu0 %v531
        %v533 = vpop.xlane.xlu0 %532
        %v534 = vsel %vm521, %v493, 0.0
        %535 = vadd.xlane.f32.xlu0 %v534
        %v536 = vpop.xlane.xlu0 %535
        %v537 = vsel %vm521, %v494, 0.0
        %538 = vadd.xlane.f32.xlu0 %v537
        %v539 = vpop.xlane.xlu0 %538
        %v540 = vsel %vm521, %v495, 0.0
        %541 = vadd.xlane.f32.xlu0 %v540
        %v542 = vpop.xlane.xlu0 %541
        %v543 = vsel %vm521, %v496, 0.0
        %544 = vadd.xlane.f32.xlu0 %v543
        %v545 = vpop.xlane.xlu0 %544
        %v546 = vsel %vm521, %v497, 0.0
        %547 = vadd.xlane.f32.xlu0 %v546
        %v548 = vpop.xlane.xlu0 %547
        %v549 = vsel %vm521, %v498, 0.0
        %550 = vadd.xlane.f32.xlu0 %v549
        %v551 = vpop.xlane.xlu0 %550
        %v552 = vsel %vm521, %v499, 0.0
        %553 = vadd.xlane.f32.xlu0 %v552
        %v554 = vpop.xlane.xlu0 %553
        %v555 = vsel %vm521, %v500, 0.0
        %556 = vadd.xlane.f32.xlu0 %v555
        %v557 = vpop.xlane.xlu0 %556
        %v558 = vsel %vm521, %v501, 0.0
        %559 = vadd.xlane.f32.xlu0 %v558
        %v560 = vpop.xlane.xlu0 %559
        %v561 = vsel %vm521, %v502, 0.0
        %562 = vadd.xlane.f32.xlu0 %v561
        %v563 = vpop.xlane.xlu0 %562
        %v564 = vsel %vm521, %v503, 0.0
        %565 = vadd.xlane.f32.xlu0 %v564
        %v566 = vpop.xlane.xlu0 %565
        %v567 = vsel %vm521, %v504, 0.0
        %568 = vadd.xlane.f32.xlu0 %v567
        %v569 = vpop.xlane.xlu0 %568
        %v570 = vsel %vm521, %v505, 0.0
        %571 = vadd.xlane.f32.xlu0 %v570
        %v572 = vpop.xlane.xlu0 %571
        %v573 = vsel %vm521, %v506, 0.0
        %574 = vadd.xlane.f32.xlu0 %v573
        %v575 = vpop.xlane.xlu0 %574
        %v576 = vsel %vm521, %v507, 0.0
        %577 = vadd.xlane.f32.xlu0 %v576
        %v578 = vpop.xlane.xlu0 %577
        %v579 = vsel %vm521, %v508, 0.0
        %580 = vadd.xlane.f32.xlu0 %v579
        %v581 = vpop.xlane.xlu0 %580
        %v582 = vsel %vm521, %v509, 0.0
        %583 = vadd.xlane.f32.xlu0 %v582
        %v584 = vpop.xlane.xlu0 %583
        %v585 = vsel %vm521, %v510, 0.0
        %586 = vadd.xlane.f32.xlu0 %v585
        %v587 = vpop.xlane.xlu0 %586
        %v588 = vsel %vm521, %v511, 0.0
        %589 = vadd.xlane.f32.xlu0 %v588
        %v590 = vpop.xlane.xlu0 %589
        %v591 = vsel %vm521, %v512, 0.0
        %592 = vadd.xlane.f32.xlu0 %v591
        %v593 = vpop.xlane.xlu0 %592
        %v594 = vsel %vm521, %v513, 0.0
        %595 = vadd.xlane.f32.xlu0 %v594
        %v596 = vpop.xlane.xlu0 %595
        %v597 = vsel %vm521, %v514, 0.0
        %598 = vadd.xlane.f32.xlu0 %v597
        %v599 = vpop.xlane.xlu0 %598
        %v600 = vsel %vm521, %v515, 0.0
        %601 = vadd.xlane.f32.xlu0 %v600
        %v602 = vpop.xlane.xlu0 %601
        %v603 = vsel %vm521, %v516, 0.0
        %604 = vadd.xlane.f32.xlu0 %v603
        %v605 = vpop.xlane.xlu0 %604
        %v606 = vsel %vm521, %v517, 0.0
        %607 = vadd.xlane.f32.xlu0 %v606
        %v608 = vpop.xlane.xlu0 %607
        %v609 = vsel %vm521, %v518, 0.0
        %610 = vadd.xlane.f32.xlu0 %v609
        %v611 = vpop.xlane.xlu0 %610
        %v612 = vsel %vm521, %v519, 0.0
        %613 = vadd.xlane.f32.xlu0 %v612
        %v614 = vpop.xlane.xlu0 %613
        %v615 = vsel %vm521, %v520, 0.0
        %616 = vadd.xlane.f32.xlu0 %v615
        %v617 = vpop.xlane.xlu0 %616
        %v618 = vrcp.pop %v524
        %v619 = vmul.f32 %v524, %v618
        %v620 = vsub.f32 1.0, %v619
        %v621 = vmul.f32 %v618, %v620
        %v622 = vadd.f32 %v618, %v621
        %vm623 = vweird.f32 %v524
        %vm624 = vweird.f32 %v618
        %vm625 = vmor %vm623, %vm624
        %v626 = vsel %vm625, %v618, %v622
        %v627 = vand.u32 2147483647, %v524
        %vm628 = vcmp.eq.f32.partialorder %v627, 8.507059e+37
        %v629 = vand.u32 %v524, 2147483648
        %v630 = vor.u32 1.1754944e-38, %v629
        %v631 = vsel %vm628, %v630, %v626
        %v632 = vrcp.pop %v527
        %v633 = vmul.f32 %v527, %v632
        %v634 = vsub.f32 1.0, %v633
        %v635 = vmul.f32 %v632, %v634
        %v636 = vadd.f32 %v632, %v635
        %vm637 = vweird.f32 %v527
        %vm638 = vweird.f32 %v632
        %vm639 = vmor %vm637, %vm638
        %v640 = vsel %vm639, %v632, %v636
        %v641 = vand.u32 2147483647, %v527
        %vm642 = vcmp.eq.f32.partialorder %v641, 8.507059e+37
        %v643 = vand.u32 %v527, 2147483648
        %v644 = vor.u32 1.1754944e-38, %v643
        %v645 = vsel %vm642, %v644, %v640
        %v646 = vrcp.pop %v530
        %v647 = vmul.f32 %v530, %v646
        %v648 = vsub.f32 1.0, %v647
        %v649 = vmul.f32 %v646, %v648
        %v650 = vadd.f32 %v646, %v649
        %vm651 = vweird.f32 %v530
        %vm652 = vweird.f32 %v646
        %vm653 = vmor %vm651, %vm652
        %v654 = vsel %vm653, %v646, %v650
        %v655 = vand.u32 2147483647, %v530
        %vm656 = vcmp.eq.f32.partialorder %v655, 8.507059e+37
        %v657 = vand.u32 %v530, 2147483648
        %v658 = vor.u32 1.1754944e-38, %v657
        %v659 = vsel %vm656, %v658, %v654
        %v660 = vrcp.pop %v533
        %v661 = vmul.f32 %v533, %v660
        %v662 = vsub.f32 1.0, %v661
        %v663 = vmul.f32 %v660, %v662
        %v664 = vadd.f32 %v660, %v663
        %vm665 = vweird.f32 %v533
        %vm666 = vweird.f32 %v660
        %vm667 = vmor %vm665, %vm666
        %v668 = vsel %vm667, %v660, %v664
        %v669 = vand.u32 2147483647, %v533
        %vm670 = vcmp.eq.f32.partialorder %v669, 8.507059e+37
        %v671 = vand.u32 %v533, 2147483648
        %v672 = vor.u32 1.1754944e-38, %v671
        %v673 = vsel %vm670, %v672, %v668
        %v674 = vrcp.pop %v536
        %v675 = vmul.f32 %v536, %v674
        %v676 = vsub.f32 1.0, %v675
        %v677 = vmul.f32 %v674, %v676
        %v678 = vadd.f32 %v674, %v677
        %vm679 = vweird.f32 %v536
        %vm680 = vweird.f32 %v674
        %vm681 = vmor %vm679, %vm680
        %v682 = vsel %vm681, %v674, %v678
        %v683 = vand.u32 2147483647, %v536
        %vm684 = vcmp.eq.f32.partialorder %v683, 8.507059e+37
        %v685 = vand.u32 %v536, 2147483648
        %v686 = vor.u32 1.1754944e-38, %v685
        %v687 = vsel %vm684, %v686, %v682
        %v688 = vrcp.pop %v539
        %v689 = vmul.f32 %v539, %v688
        %v690 = vsub.f32 1.0, %v689
        %v691 = vmul.f32 %v688, %v690
        %v692 = vadd.f32 %v688, %v691
        %vm693 = vweird.f32 %v539
        %vm694 = vweird.f32 %v688
        %vm695 = vmor %vm693, %vm694
        %v696 = vsel %vm695, %v688, %v692
        %v697 = vand.u32 2147483647, %v539
        %vm698 = vcmp.eq.f32.partialorder %v697, 8.507059e+37
        %v699 = vand.u32 %v539, 2147483648
        %v700 = vor.u32 1.1754944e-38, %v699
        %v701 = vsel %vm698, %v700, %v696
        %v702 = vrcp.pop %v542
        %v703 = vmul.f32 %v542, %v702
        %v704 = vsub.f32 1.0, %v703
        %v705 = vmul.f32 %v702, %v704
        %v706 = vadd.f32 %v702, %v705
        %vm707 = vweird.f32 %v542
        %vm708 = vweird.f32 %v702
        %vm709 = vmor %vm707, %vm708
        %v710 = vsel %vm709, %v702, %v706
        %v711 = vand.u32 2147483647, %v542
        %vm712 = vcmp.eq.f32.partialorder %v711, 8.507059e+37
        %v713 = vand.u32 %v542, 2147483648
        %v714 = vor.u32 1.1754944e-38, %v713
        %v715 = vsel %vm712, %v714, %v710
        %v716 = vrcp.pop %v545
        %v717 = vmul.f32 %v545, %v716
        %v718 = vsub.f32 1.0, %v717
        %v719 = vmul.f32 %v716, %v718
        %v720 = vadd.f32 %v716, %v719
        %vm721 = vweird.f32 %v545
        %vm722 = vweird.f32 %v716
        %vm723 = vmor %vm721, %vm722
        %v724 = vsel %vm723, %v716, %v720
        %v725 = vand.u32 2147483647, %v545
        %vm726 = vcmp.eq.f32.partialorder %v725, 8.507059e+37
        %v727 = vand.u32 %v545, 2147483648
        %v728 = vor.u32 1.1754944e-38, %v727
        %v729 = vsel %vm726, %v728, %v724
        %v730 = vrcp.pop %v548
        %v731 = vmul.f32 %v548, %v730
        %v732 = vsub.f32 1.0, %v731
        %v733 = vmul.f32 %v730, %v732
        %v734 = vadd.f32 %v730, %v733
        %vm735 = vweird.f32 %v548
        %vm736 = vweird.f32 %v730
        %vm737 = vmor %vm735, %vm736
        %v738 = vsel %vm737, %v730, %v734
        %v739 = vand.u32 2147483647, %v548
        %vm740 = vcmp.eq.f32.partialorder %v739, 8.507059e+37
        %v741 = vand.u32 %v548, 2147483648
        %v742 = vor.u32 1.1754944e-38, %v741
        %v743 = vsel %vm740, %v742, %v738
        %v744 = vrcp.pop %v551
        %v745 = vmul.f32 %v551, %v744
        %v746 = vsub.f32 1.0, %v745
        %v747 = vmul.f32 %v744, %v746
        %v748 = vadd.f32 %v744, %v747
        %vm749 = vweird.f32 %v551
        %vm750 = vweird.f32 %v744
        %vm751 = vmor %vm749, %vm750
        %v752 = vsel %vm751, %v744, %v748
        %v753 = vand.u32 2147483647, %v551
        %vm754 = vcmp.eq.f32.partialorder %v753, 8.507059e+37
        %v755 = vand.u32 %v551, 2147483648
        %v756 = vor.u32 1.1754944e-38, %v755
        %v757 = vsel %vm754, %v756, %v752
        %v758 = vrcp.pop %v554
        %v759 = vmul.f32 %v554, %v758
        %v760 = vsub.f32 1.0, %v759
        %v761 = vmul.f32 %v758, %v760
        %v762 = vadd.f32 %v758, %v761
        %vm763 = vweird.f32 %v554
        %vm764 = vweird.f32 %v758
        %vm765 = vmor %vm763, %vm764
        %v766 = vsel %vm765, %v758, %v762
        %v767 = vand.u32 2147483647, %v554
        %vm768 = vcmp.eq.f32.partialorder %v767, 8.507059e+37
        %v769 = vand.u32 %v554, 2147483648
        %v770 = vor.u32 1.1754944e-38, %v769
        %v771 = vsel %vm768, %v770, %v766
        %v772 = vrcp.pop %v557
        %v773 = vmul.f32 %v557, %v772
        %v774 = vsub.f32 1.0, %v773
        %v775 = vmul.f32 %v772, %v774
        %v776 = vadd.f32 %v772, %v775
        %vm777 = vweird.f32 %v557
        %vm778 = vweird.f32 %v772
        %vm779 = vmor %vm777, %vm778
        %v780 = vsel %vm779, %v772, %v776
        %v781 = vand.u32 2147483647, %v557
        %vm782 = vcmp.eq.f32.partialorder %v781, 8.507059e+37
        %v783 = vand.u32 %v557, 2147483648
        %v784 = vor.u32 1.1754944e-38, %v783
        %v785 = vsel %vm782, %v784, %v780
        %v786 = vrcp.pop %v560
        %v787 = vmul.f32 %v560, %v786
        %v788 = vsub.f32 1.0, %v787
        %v789 = vmul.f32 %v786, %v788
        %v790 = vadd.f32 %v786, %v789
        %vm791 = vweird.f32 %v560
        %vm792 = vweird.f32 %v786
        %vm793 = vmor %vm791, %vm792
        %v794 = vsel %vm793, %v786, %v790
        %v795 = vand.u32 2147483647, %v560
        %vm796 = vcmp.eq.f32.partialorder %v795, 8.507059e+37
        %v797 = vand.u32 %v560, 2147483648
        %v798 = vor.u32 1.1754944e-38, %v797
        %v799 = vsel %vm796, %v798, %v794
        %v800 = vrcp.pop %v563
        %v801 = vmul.f32 %v563, %v800
        %v802 = vsub.f32 1.0, %v801
        %v803 = vmul.f32 %v800, %v802
        %v804 = vadd.f32 %v800, %v803
        %vm805 = vweird.f32 %v563
        %vm806 = vweird.f32 %v800
        %vm807 = vmor %vm805, %vm806
        %v808 = vsel %vm807, %v800, %v804
        %v809 = vand.u32 2147483647, %v563
        %vm810 = vcmp.eq.f32.partialorder %v809, 8.507059e+37
        %v811 = vand.u32 %v563, 2147483648
        %v812 = vor.u32 1.1754944e-38, %v811
        %v813 = vsel %vm810, %v812, %v808
        %v814 = vrcp.pop %v566
        %v815 = vmul.f32 %v566, %v814
        %v816 = vsub.f32 1.0, %v815
        %v817 = vmul.f32 %v814, %v816
        %v818 = vadd.f32 %v814, %v817
        %vm819 = vweird.f32 %v566
        %vm820 = vweird.f32 %v814
        %vm821 = vmor %vm819, %vm820
        %v822 = vsel %vm821, %v814, %v818
        %v823 = vand.u32 2147483647, %v566
        %vm824 = vcmp.eq.f32.partialorder %v823, 8.507059e+37
        %v825 = vand.u32 %v566, 2147483648
        %v826 = vor.u32 1.1754944e-38, %v825
        %v827 = vsel %vm824, %v826, %v822
        %v828 = vrcp.pop %v569
        %v829 = vmul.f32 %v569, %v828
        %v830 = vsub.f32 1.0, %v829
        %v831 = vmul.f32 %v828, %v830
        %v832 = vadd.f32 %v828, %v831
        %vm833 = vweird.f32 %v569
        %vm834 = vweird.f32 %v828
        %vm835 = vmor %vm833, %vm834
        %v836 = vsel %vm835, %v828, %v832
        %v837 = vand.u32 2147483647, %v569
        %vm838 = vcmp.eq.f32.partialorder %v837, 8.507059e+37
        %v839 = vand.u32 %v569, 2147483648
        %v840 = vor.u32 1.1754944e-38, %v839
        %v841 = vsel %vm838, %v840, %v836
        %v842 = vrcp.pop %v572
        %v843 = vmul.f32 %v572, %v842
        %v844 = vsub.f32 1.0, %v843
        %v845 = vmul.f32 %v842, %v844
        %v846 = vadd.f32 %v842, %v845
        %vm847 = vweird.f32 %v572
        %vm848 = vweird.f32 %v842
        %vm849 = vmor %vm847, %vm848
        %v850 = vsel %vm849, %v842, %v846
        %v851 = vand.u32 2147483647, %v572
        %vm852 = vcmp.eq.f32.partialorder %v851, 8.507059e+37
        %v853 = vand.u32 %v572, 2147483648
        %v854 = vor.u32 1.1754944e-38, %v853
        %v855 = vsel %vm852, %v854, %v850
        %v856 = vrcp.pop %v575
        %v857 = vmul.f32 %v575, %v856
        %v858 = vsub.f32 1.0, %v857
        %v859 = vmul.f32 %v856, %v858
        %v860 = vadd.f32 %v856, %v859
        %vm861 = vweird.f32 %v575
        %vm862 = vweird.f32 %v856
        %vm863 = vmor %vm861, %vm862
        %v864 = vsel %vm863, %v856, %v860
        %v865 = vand.u32 2147483647, %v575
        %vm866 = vcmp.eq.f32.partialorder %v865, 8.507059e+37
        %v867 = vand.u32 %v575, 2147483648
        %v868 = vor.u32 1.1754944e-38, %v867
        %v869 = vsel %vm866, %v868, %v864
        %v870 = vrcp.pop %v578
        %v871 = vmul.f32 %v578, %v870
        %v872 = vsub.f32 1.0, %v871
        %v873 = vmul.f32 %v870, %v872
        %v874 = vadd.f32 %v870, %v873
        %vm875 = vweird.f32 %v578
        %vm876 = vweird.f32 %v870
        %vm877 = vmor %vm875, %vm876
        %v878 = vsel %vm877, %v870, %v874
        %v879 = vand.u32 2147483647, %v578
        %vm880 = vcmp.eq.f32.partialorder %v879, 8.507059e+37
        %v881 = vand.u32 %v578, 2147483648
        %v882 = vor.u32 1.1754944e-38, %v881
        %v883 = vsel %vm880, %v882, %v878
        %v884 = vrcp.pop %v581
        %v885 = vmul.f32 %v581, %v884
        %v886 = vsub.f32 1.0, %v885
        %v887 = vmul.f32 %v884, %v886
        %v888 = vadd.f32 %v884, %v887
        %vm889 = vweird.f32 %v581
        %vm890 = vweird.f32 %v884
        %vm891 = vmor %vm889, %vm890
        %v892 = vsel %vm891, %v884, %v888
        %v893 = vand.u32 2147483647, %v581
        %vm894 = vcmp.eq.f32.partialorder %v893, 8.507059e+37
        %v895 = vand.u32 %v581, 2147483648
        %v896 = vor.u32 1.1754944e-38, %v895
        %v897 = vsel %vm894, %v896, %v892
        %v898 = vrcp.pop %v584
        %v899 = vmul.f32 %v584, %v898
        %v900 = vsub.f32 1.0, %v899
        %v901 = vmul.f32 %v898, %v900
        %v902 = vadd.f32 %v898, %v901
        %vm903 = vweird.f32 %v584
        %vm904 = vweird.f32 %v898
        %vm905 = vmor %vm903, %vm904
        %v906 = vsel %vm905, %v898, %v902
        %v907 = vand.u32 2147483647, %v584
        %vm908 = vcmp.eq.f32.partialorder %v907, 8.507059e+37
        %v909 = vand.u32 %v584, 2147483648
        %v910 = vor.u32 1.1754944e-38, %v909
        %v911 = vsel %vm908, %v910, %v906
        %v912 = vrcp.pop %v587
        %v913 = vmul.f32 %v587, %v912
        %v914 = vsub.f32 1.0, %v913
        %v915 = vmul.f32 %v912, %v914
        %v916 = vadd.f32 %v912, %v915
        %vm917 = vweird.f32 %v587
        %vm918 = vweird.f32 %v912
        %vm919 = vmor %vm917, %vm918
        %v920 = vsel %vm919, %v912, %v916
        %v921 = vand.u32 2147483647, %v587
        %vm922 = vcmp.eq.f32.partialorder %v921, 8.507059e+37
        %v923 = vand.u32 %v587, 2147483648
        %v924 = vor.u32 1.1754944e-38, %v923
        %v925 = vsel %vm922, %v924, %v920
        %v926 = vrcp.pop %v590
        %v927 = vmul.f32 %v590, %v926
        %v928 = vsub.f32 1.0, %v927
        %v929 = vmul.f32 %v926, %v928
        %v930 = vadd.f32 %v926, %v929
        %vm931 = vweird.f32 %v590
        %vm932 = vweird.f32 %v926
        %vm933 = vmor %vm931, %vm932
        %v934 = vsel %vm933, %v926, %v930
        %v935 = vand.u32 2147483647, %v590
        %vm936 = vcmp.eq.f32.partialorder %v935, 8.507059e+37
        %v937 = vand.u32 %v590, 2147483648
        %v938 = vor.u32 1.1754944e-38, %v937
        %v939 = vsel %vm936, %v938, %v934
        %v940 = vrcp.pop %v593
        %v941 = vmul.f32 %v593, %v940
        %v942 = vsub.f32 1.0, %v941
        %v943 = vmul.f32 %v940, %v942
        %v944 = vadd.f32 %v940, %v943
        %vm945 = vweird.f32 %v593
        %vm946 = vweird.f32 %v940
        %vm947 = vmor %vm945, %vm946
        %v948 = vsel %vm947, %v940, %v944
        %v949 = vand.u32 2147483647, %v593
        %vm950 = vcmp.eq.f32.partialorder %v949, 8.507059e+37
        %v951 = vand.u32 %v593, 2147483648
        %v952 = vor.u32 1.1754944e-38, %v951
        %v953 = vsel %vm950, %v952, %v948
        %v954 = vrcp.pop %v596
        %v955 = vmul.f32 %v596, %v954
        %v956 = vsub.f32 1.0, %v955
        %v957 = vmul.f32 %v954, %v956
        %v958 = vadd.f32 %v954, %v957
        %vm959 = vweird.f32 %v596
        %vm960 = vweird.f32 %v954
        %vm961 = vmor %vm959, %vm960
        %v962 = vsel %vm961, %v954, %v958
        %v963 = vand.u32 2147483647, %v596
        %vm964 = vcmp.eq.f32.partialorder %v963, 8.507059e+37
        %v965 = vand.u32 %v596, 2147483648
        %v966 = vor.u32 1.1754944e-38, %v965
        %v967 = vsel %vm964, %v966, %v962
        %v968 = vrcp.pop %v599
        %v969 = vmul.f32 %v599, %v968
        %v970 = vsub.f32 1.0, %v969
        %v971 = vmul.f32 %v968, %v970
        %v972 = vadd.f32 %v968, %v971
        %vm973 = vweird.f32 %v599
        %vm974 = vweird.f32 %v968
        %vm975 = vmor %vm973, %vm974
        %v976 = vsel %vm975, %v968, %v972
        %v977 = vand.u32 2147483647, %v599
        %vm978 = vcmp.eq.f32.partialorder %v977, 8.507059e+37
        %v979 = vand.u32 %v599, 2147483648
        %v980 = vor.u32 1.1754944e-38, %v979
        %v981 = vsel %vm978, %v980, %v976
        %v982 = vrcp.pop %v602
        %v983 = vmul.f32 %v602, %v982
        %v984 = vsub.f32 1.0, %v983
        %v985 = vmul.f32 %v982, %v984
        %v986 = vadd.f32 %v982, %v985
        %vm987 = vweird.f32 %v602
        %vm988 = vweird.f32 %v982
        %vm989 = vmor %vm987, %vm988
        %v990 = vsel %vm989, %v982, %v986
        %v991 = vand.u32 2147483647, %v602
        %vm992 = vcmp.eq.f32.partialorder %v991, 8.507059e+37
        %v993 = vand.u32 %v602, 2147483648
        %v994 = vor.u32 1.1754944e-38, %v993
        %v995 = vsel %vm992, %v994, %v990
        %v996 = vrcp.pop %v605
        %v997 = vmul.f32 %v605, %v996
        %v998 = vsub.f32 1.0, %v997
        %v999 = vmul.f32 %v996, %v998
        %v1000 = vadd.f32 %v996, %v999
        %vm1001 = vweird.f32 %v605
        %vm1002 = vweird.f32 %v996
        %vm1003 = vmor %vm1001, %vm1002
        %v1004 = vsel %vm1003, %v996, %v1000
        %v1005 = vand.u32 2147483647, %v605
        %vm1006 = vcmp.eq.f32.partialorder %v1005, 8.507059e+37
        %v1007 = vand.u32 %v605, 2147483648
        %v1008 = vor.u32 1.1754944e-38, %v1007
        %v1009 = vsel %vm1006, %v1008, %v1004
        %v1010 = vrcp.pop %v608
        %v1011 = vmul.f32 %v608, %v1010
        %v1012 = vsub.f32 1.0, %v1011
        %v1013 = vmul.f32 %v1010, %v1012
        %v1014 = vadd.f32 %v1010, %v1013
        %vm1015 = vweird.f32 %v608
        %vm1016 = vweird.f32 %v1010
        %vm1017 = vmor %vm1015, %vm1016
        %v1018 = vsel %vm1017, %v1010, %v1014
        %v1019 = vand.u32 2147483647, %v608
        %vm1020 = vcmp.eq.f32.partialorder %v1019, 8.507059e+37
        %v1021 = vand.u32 %v608, 2147483648
        %v1022 = vor.u32 1.1754944e-38, %v1021
        %v1023 = vsel %vm1020, %v1022, %v1018
        %v1024 = vrcp.pop %v611
        %v1025 = vmul.f32 %v611, %v1024
        %v1026 = vsub.f32 1.0, %v1025
        %v1027 = vmul.f32 %v1024, %v1026
        %v1028 = vadd.f32 %v1024, %v1027
        %vm1029 = vweird.f32 %v611
        %vm1030 = vweird.f32 %v1024
        %vm1031 = vmor %vm1029, %vm1030
        %v1032 = vsel %vm1031, %v1024, %v1028
        %v1033 = vand.u32 2147483647, %v611
        %vm1034 = vcmp.eq.f32.partialorder %v1033, 8.507059e+37
        %v1035 = vand.u32 %v611, 2147483648
        %v1036 = vor.u32 1.1754944e-38, %v1035
        %v1037 = vsel %vm1034, %v1036, %v1032
        %v1038 = vrcp.pop %v614
        %v1039 = vmul.f32 %v614, %v1038
        %v1040 = vsub.f32 1.0, %v1039
        %v1041 = vmul.f32 %v1038, %v1040
        %v1042 = vadd.f32 %v1038, %v1041
        %vm1043 = vweird.f32 %v614
        %vm1044 = vweird.f32 %v1038
        %vm1045 = vmor %vm1043, %vm1044
        %v1046 = vsel %vm1045, %v1038, %v1042
        %v1047 = vand.u32 2147483647, %v614
        %vm1048 = vcmp.eq.f32.partialorder %v1047, 8.507059e+37
        %v1049 = vand.u32 %v614, 2147483648
        %v1050 = vor.u32 1.1754944e-38, %v1049
        %v1051 = vsel %vm1048, %v1050, %v1046
        %v1052 = vrcp.pop %v617
        %v1053 = vmul.f32 %v617, %v1052
        %v1054 = vsub.f32 1.0, %v1053
        %v1055 = vmul.f32 %v1052, %v1054
        %v1056 = vadd.f32 %v1052, %v1055
        %vm1057 = vweird.f32 %v617
        %vm1058 = vweird.f32 %v1052
        %vm1059 = vmor %vm1057, %vm1058
        %v1060 = vsel %vm1059, %v1052, %v1056
        %v1061 = vand.u32 2147483647, %v617
        %vm1062 = vcmp.eq.f32.partialorder %v1061, 8.507059e+37
        %v1063 = vand.u32 %v617, 2147483648
        %v1064 = vor.u32 1.1754944e-38, %v1063
        %v1065 = vsel %vm1062, %v1064, %v1060
        %v1066 = vmul.f32 %v489, %v631
        %v1067 = vmul.f32 %v490, %v645
        %v1068 = vmul.f32 %v491, %v659
        %v1069 = vmul.f32 %v492, %v673
        %v1070 = vmul.f32 %v493, %v687
        %v1071 = vmul.f32 %v494, %v701
        %v1072 = vmul.f32 %v495, %v715
        %v1073 = vmul.f32 %v496, %v729
        %v1074 = vmul.f32 %v497, %v743
        %v1075 = vmul.f32 %v498, %v757
        %v1076 = vmul.f32 %v499, %v771
        %v1077 = vmul.f32 %v500, %v785
        %v1078 = vmul.f32 %v501, %v799
        %v1079 = vmul.f32 %v502, %v813
        %v1080 = vmul.f32 %v503, %v827
        %v1081 = vmul.f32 %v504, %v841
        %v1082 = vmul.f32 %v505, %v855
        %v1083 = vmul.f32 %v506, %v869
        %v1084 = vmul.f32 %v507, %v883
        %v1085 = vmul.f32 %v508, %v897
        %v1086 = vmul.f32 %v509, %v911
        %v1087 = vmul.f32 %v510, %v925
        %v1088 = vmul.f32 %v511, %v939
        %v1089 = vmul.f32 %v512, %v953
        %v1090 = vmul.f32 %v513, %v967
        %v1091 = vmul.f32 %v514, %v981
        %v1092 = vmul.f32 %v515, %v995
        %v1093 = vmul.f32 %v516, %v1009
        %v1094 = vmul.f32 %v517, %v1023
        %v1095 = vmul.f32 %v518, %v1037
        %v1096 = vmul.f32 %v519, %v1051
        %v1097 = vmul.f32 %v520, %v1065
        %v1098 = vld [vmem:[%s3] sm:$0xff]
        %v1099 = vld [vmem:[%s3 + $0x8] sm:$0xff]
        %v1100 = vld [vmem:[%s3 + $0x10] sm:$0xff]
        %v1101 = vld [vmem:[%s3 + $0x18] sm:$0xff]
        %v1103 = vsel %vm521, %v1066, 0
        %v1106 = vsel %vm521, %v1067, 0
        %v1109 = vsel %vm521, %v1068, 0
        %v1112 = vsel %vm521, %v1069, 0
        %v1115 = vsel %vm521, %v1070, 0
        %v1118 = vsel %vm521, %v1071, 0
        %v1121 = vsel %vm521, %v1072, 0
        %v1124 = vsel %vm521, %v1073, 0
        %v1127 = vsel %vm521, %v1074, 0
        %v1130 = vsel %vm521, %v1075, 0
        %v1133 = vsel %vm521, %v1076, 0
        %v1136 = vsel %vm521, %v1077, 0
        %v1139 = vsel %vm521, %v1078, 0
        %v1142 = vsel %vm521, %v1079, 0
        %v1145 = vsel %vm521, %v1080, 0
        %v1148 = vsel %vm521, %v1081, 0
        %v1151 = vsel %vm521, %v1082, 0
        %v1154 = vsel %vm521, %v1083, 0
        %v1157 = vsel %vm521, %v1084, 0
        %v1160 = vsel %vm521, %v1085, 0
        %v1163 = vsel %vm521, %v1086, 0
        %v1166 = vsel %vm521, %v1087, 0
        %v1169 = vsel %vm521, %v1088, 0
        %v1172 = vsel %vm521, %v1089, 0
        %v1175 = vsel %vm521, %v1090, 0
        %v1178 = vsel %vm521, %v1091, 0
        %v1181 = vsel %vm521, %v1092, 0
        %v1184 = vsel %vm521, %v1093, 0
        %v1187 = vsel %vm521, %v1094, 0
        %v1190 = vsel %vm521, %v1095, 0
        %v1193 = vsel %vm521, %v1096, 0
        %v1196 = vsel %vm521, %v1097, 0
        %1198 = vmatpush.msra.mxu0 0.0
        %1199 = vmatpush.msra.mxu0 0.0
        %1200 = vmatpush.msra.mxu0 0.0
        %1201 = vmatpush.msra.mxu0 0.0
        %1202 = vmatpush.msra.mxu0 0.0
        %1203 = vmatpush.msra.mxu0 0.0
        %1204 = vmatpush.msra.mxu0 0.0
        %1205 = vmatpush.msra.mxu0 0.0
        %1206 = vmatpush.msra.mxu0 0.0
        %1207 = vmatpush.msra.mxu0 0.0
        %1208 = vmatpush.msra.mxu0 0.0
        %1209 = vmatpush.msra.mxu0 0.0
        %1210 = vmatpush.msra.mxu0 0.0
        %1211 = vmatpush.msra.mxu0 0.0
        %1212 = vmatpush.msra.mxu0 %v1100
        %1213 = vmatpush.msra.mxu0 %v1098
        %1214 = vmatmul.f32.gmra.mxu0 %v1103
        %v1215 = vpop.f32.mrf.mxu0
        %v1216 = vadd.f32 0.0, %v1215
        %1217 = vmatmul.f32.gmra.mxu0 %v1106
        %v1218 = vpop.f32.mrf.mxu0
        %v1219 = vadd.f32 0.0, %v1218
        %1220 = vmatmul.f32.gmra.mxu0 %v1109
        %v1221 = vpop.f32.mrf.mxu0
        %v1222 = vadd.f32 0.0, %v1221
        %1223 = vmatmul.f32.gmra.mxu0 %v1112
        %v1224 = vpop.f32.mrf.mxu0
        %v1225 = vadd.f32 0.0, %v1224
        %1226 = vmatmul.f32.gmra.mxu0 %v1115
        %v1227 = vpop.f32.mrf.mxu0
        %v1228 = vadd.f32 0.0, %v1227
        %1229 = vmatmul.f32.gmra.mxu0 %v1118
        %v1230 = vpop.f32.mrf.mxu0
        %v1231 = vadd.f32 0.0, %v1230
        %1232 = vmatmul.f32.gmra.mxu0 %v1121
        %v1233 = vpop.f32.mrf.mxu0
        %v1234 = vadd.f32 0.0, %v1233
        %1235 = vmatmul.f32.gmra.mxu0 %v1124
        %v1236 = vpop.f32.mrf.mxu0
        %v1237 = vadd.f32 0.0, %v1236
        %1238 = vmatmul.f32.gmra.mxu0 %v1127
        %v1239 = vpop.f32.mrf.mxu0
        %v1240 = vadd.f32 0.0, %v1239
        %1241 = vmatmul.f32.gmra.mxu0 %v1130
        %v1242 = vpop.f32.mrf.mxu0
        %v1243 = vadd.f32 0.0, %v1242
        %1244 = vmatmul.f32.gmra.mxu0 %v1133
        %v1245 = vpop.f32.mrf.mxu0
        %v1246 = vadd.f32 0.0, %v1245
        %1247 = vmatmul.f32.gmra.mxu0 %v1136
        %v1248 = vpop.f32.mrf.mxu0
        %v1249 = vadd.f32 0.0, %v1248
        %1250 = vmatmul.f32.gmra.mxu0 %v1139
        %v1251 = vpop.f32.mrf.mxu0
        %v1252 = vadd.f32 0.0, %v1251
        %1253 = vmatmul.f32.gmra.mxu0 %v1142
        %v1254 = vpop.f32.mrf.mxu0
        %v1255 = vadd.f32 0.0, %v1254
        %1256 = vmatmul.f32.gmra.mxu0 %v1145
        %v1257 = vpop.f32.mrf.mxu0
        %v1258 = vadd.f32 0.0, %v1257
        %1259 = vmatmul.f32.gmra.mxu0 %v1148
        %v1260 = vpop.f32.mrf.mxu0
        %v1261 = vadd.f32 0.0, %v1260
        %1262 = vmatmul.f32.gmra.mxu0 %v1151
        %v1263 = vpop.f32.mrf.mxu0
        %v1264 = vadd.f32 0.0, %v1263
        %1265 = vmatmul.f32.gmra.mxu0 %v1154
        %v1266 = vpop.f32.mrf.mxu0
        %v1267 = vadd.f32 0.0, %v1266
        %1268 = vmatmul.f32.gmra.mxu0 %v1157
        %v1269 = vpop.f32.mrf.mxu0
        %v1270 = vadd.f32 0.0, %v1269
        %1271 = vmatmul.f32.gmra.mxu0 %v1160
        %v1272 = vpop.f32.mrf.mxu0
        %v1273 = vadd.f32 0.0, %v1272
        %1274 = vmatmul.f32.gmra.mxu0 %v1163
        %v1275 = vpop.f32.mrf.mxu0
        %v1276 = vadd.f32 0.0, %v1275
        %1277 = vmatmul.f32.gmra.mxu0 %v1166
        %v1278 = vpop.f32.mrf.mxu0
        %v1279 = vadd.f32 0.0, %v1278
        %1280 = vmatmul.f32.gmra.mxu0 %v1169
        %v1281 = vpop.f32.mrf.mxu0
        %v1282 = vadd.f32 0.0, %v1281
        %1283 = vmatmul.f32.gmra.mxu0 %v1172
        %v1284 = vpop.f32.mrf.mxu0
        %v1285 = vadd.f32 0.0, %v1284
        %1286 = vmatmul.f32.gmra.mxu0 %v1175
        %v1287 = vpop.f32.mrf.mxu0
        %v1288 = vadd.f32 0.0, %v1287
        %1289 = vmatmul.f32.gmra.mxu0 %v1178
        %v1290 = vpop.f32.mrf.mxu0
        %v1291 = vadd.f32 0.0, %v1290
        %1292 = vmatmul.f32.gmra.mxu0 %v1181
        %v1293 = vpop.f32.mrf.mxu0
        %v1294 = vadd.f32 0.0, %v1293
        %1295 = vmatmul.f32.gmra.mxu0 %v1184
        %v1296 = vpop.f32.mrf.mxu0
        %v1297 = vadd.f32 0.0, %v1296
        %1298 = vmatmul.f32.gmra.mxu0 %v1187
        %v1299 = vpop.f32.mrf.mxu0
        %v1300 = vadd.f32 0.0, %v1299
        %1301 = vmatmul.f32.gmra.mxu0 %v1190
        %v1302 = vpop.f32.mrf.mxu0
        %v1303 = vadd.f32 0.0, %v1302
        %1304 = vmatmul.f32.gmra.mxu0 %v1193
        %v1305 = vpop.f32.mrf.mxu0
        %v1306 = vadd.f32 0.0, %v1305
        %1307 = vmatmul.f32.gmra.mxu0 %v1196
        %v1308 = vpop.f32.mrf.mxu0
        %v1309 = vadd.f32 0.0, %v1308
        %1310 = vdwg.mxu0
        %1311 = vmatpush.msra.mxu0 0.0
        %1312 = vmatpush.msra.mxu0 0.0
        %1313 = vmatpush.msra.mxu0 0.0
        %1314 = vmatpush.msra.mxu0 0.0
        %1315 = vmatpush.msra.mxu0 0.0
        %1316 = vmatpush.msra.mxu0 0.0
        %1317 = vmatpush.msra.mxu0 0.0
        %1318 = vmatpush.msra.mxu0 0.0
        %1319 = vmatpush.msra.mxu0 0.0
        %1320 = vmatpush.msra.mxu0 0.0
        %1321 = vmatpush.msra.mxu0 0.0
        %1322 = vmatpush.msra.mxu0 0.0
        %1323 = vmatpush.msra.mxu0 0.0
        %1324 = vmatpush.msra.mxu0 0.0
        %1325 = vmatpush.msra.mxu0 %v1101
        %1326 = vmatpush.msra.mxu0 %v1099
        %1327 = vmatmul.f32.gmra.mxu0 %v1103
        %v1328 = vpop.f32.mrf.mxu0
        %v1329 = vadd.f32 0.0, %v1328
        %1330 = vmatmul.f32.gmra.mxu0 %v1106
        %v1331 = vpop.f32.mrf.mxu0
        %v1332 = vadd.f32 0.0, %v1331
        %1333 = vmatmul.f32.gmra.mxu0 %v1109
        %v1334 = vpop.f32.mrf.mxu0
        %v1335 = vadd.f32 0.0, %v1334
        %1336 = vmatmul.f32.gmra.mxu0 %v1112
        %v1337 = vpop.f32.mrf.mxu0
        %v1338 = vadd.f32 0.0, %v1337
        %1339 = vmatmul.f32.gmra.mxu0 %v1115
        %v1340 = vpop.f32.mrf.mxu0
        %v1341 = vadd.f32 0.0, %v1340
        %1342 = vmatmul.f32.gmra.mxu0 %v1118
        %v1343 = vpop.f32.mrf.mxu0
        %v1344 = vadd.f32 0.0, %v1343
        %1345 = vmatmul.f32.gmra.mxu0 %v1121
        %v1346 = vpop.f32.mrf.mxu0
        %v1347 = vadd.f32 0.0, %v1346
        %1348 = vmatmul.f32.gmra.mxu0 %v1124
        %v1349 = vpop.f32.mrf.mxu0
        %v1350 = vadd.f32 0.0, %v1349
        %1351 = vmatmul.f32.gmra.mxu0 %v1127
        %v1352 = vpop.f32.mrf.mxu0
        %v1353 = vadd.f32 0.0, %v1352
        %1354 = vmatmul.f32.gmra.mxu0 %v1130
        %v1355 = vpop.f32.mrf.mxu0
        %v1356 = vadd.f32 0.0, %v1355
        %1357 = vmatmul.f32.gmra.mxu0 %v1133
        %v1358 = vpop.f32.mrf.mxu0
        %v1359 = vadd.f32 0.0, %v1358
        %1360 = vmatmul.f32.gmra.mxu0 %v1136
        %v1361 = vpop.f32.mrf.mxu0
        %v1362 = vadd.f32 0.0, %v1361
        %1363 = vmatmul.f32.gmra.mxu0 %v1139
        %v1364 = vpop.f32.mrf.mxu0
        %v1365 = vadd.f32 0.0, %v1364
        %1366 = vmatmul.f32.gmra.mxu0 %v1142
        %v1367 = vpop.f32.mrf.mxu0
        %v1368 = vadd.f32 0.0, %v1367
        %1369 = vmatmul.f32.gmra.mxu0 %v1145
        %v1370 = vpop.f32.mrf.mxu0
        %v1371 = vadd.f32 0.0, %v1370
        %1372 = vmatmul.f32.gmra.mxu0 %v1148
        %v1373 = vpop.f32.mrf.mxu0
        %v1374 = vadd.f32 0.0, %v1373
        %1375 = vmatmul.f32.gmra.mxu0 %v1151
        %v1376 = vpop.f32.mrf.mxu0
        %v1377 = vadd.f32 0.0, %v1376
        %1378 = vmatmul.f32.gmra.mxu0 %v1154
        %v1379 = vpop.f32.mrf.mxu0
        %v1380 = vadd.f32 0.0, %v1379
        %1381 = vmatmul.f32.gmra.mxu0 %v1157
        %v1382 = vpop.f32.mrf.mxu0
        %v1383 = vadd.f32 0.0, %v1382
        %1384 = vmatmul.f32.gmra.mxu0 %v1160
        %v1385 = vpop.f32.mrf.mxu0
        %v1386 = vadd.f32 0.0, %v1385
        %1387 = vmatmul.f32.gmra.mxu0 %v1163
        %v1388 = vpop.f32.mrf.mxu0
        %v1389 = vadd.f32 0.0, %v1388
        %1390 = vmatmul.f32.gmra.mxu0 %v1166
        %v1391 = vpop.f32.mrf.mxu0
        %v1392 = vadd.f32 0.0, %v1391
        %1393 = vmatmul.f32.gmra.mxu0 %v1169
        %v1394 = vpop.f32.mrf.mxu0
        %v1395 = vadd.f32 0.0, %v1394
        %1396 = vmatmul.f32.gmra.mxu0 %v1172
        %v1397 = vpop.f32.mrf.mxu0
        %v1398 = vadd.f32 0.0, %v1397
        %1399 = vmatmul.f32.gmra.mxu0 %v1175
        %v1400 = vpop.f32.mrf.mxu0
        %v1401 = vadd.f32 0.0, %v1400
        %1402 = vmatmul.f32.gmra.mxu0 %v1178
        %v1403 = vpop.f32.mrf.mxu0
        %v1404 = vadd.f32 0.0, %v1403
        %1405 = vmatmul.f32.gmra.mxu0 %v1181
        %v1406 = vpop.f32.mrf.mxu0
        %v1407 = vadd.f32 0.0, %v1406
        %1408 = vmatmul.f32.gmra.mxu0 %v1184
        %v1409 = vpop.f32.mrf.mxu0
        %v1410 = vadd.f32 0.0, %v1409
        %1411 = vmatmul.f32.gmra.mxu0 %v1187
        %v1412 = vpop.f32.mrf.mxu0
        %v1413 = vadd.f32 0.0, %v1412
        %1414 = vmatmul.f32.gmra.mxu0 %v1190
        %v1415 = vpop.f32.mrf.mxu0
        %v1416 = vadd.f32 0.0, %v1415
        %1417 = vmatmul.f32.gmra.mxu0 %v1193
        %v1418 = vpop.f32.mrf.mxu0
        %v1419 = vadd.f32 0.0, %v1418
        %1420 = vmatmul.f32.gmra.mxu0 %v1196
        %v1421 = vpop.f32.mrf.mxu0
        %v1422 = vadd.f32 0.0, %v1421
        %1423 = vdwg.mxu0
        %v1424 = vld [vmem:[%s4] sm:$0xff]
        %v1425 = vld [vmem:[%s4 + $0x8] sm:$0xff]
        %v1426 = vld [vmem:[%s4 + $0x10] sm:$0xff]
        %v1427 = vld [vmem:[%s4 + $0x18] sm:$0xff]
        %v1428 = vld [vmem:[%s4 + $0x20] sm:$0xff]
        %v1429 = vld [vmem:[%s4 + $0x28] sm:$0xff]
        %v1430 = vld [vmem:[%s4 + $0x30] sm:$0xff]
        %v1431 = vld [vmem:[%s4 + $0x38] sm:$0xff]
        %v1432 = vld [vmem:[%s4 + $0x40] sm:$0xff]
        %v1433 = vld [vmem:[%s4 + $0x48] sm:$0xff]
        %v1434 = vld [vmem:[%s4 + $0x50] sm:$0xff]
        %v1435 = vld [vmem:[%s4 + $0x58] sm:$0xff]
        %v1436 = vld [vmem:[%s4 + $0x60] sm:$0xff]
        %v1437 = vld [vmem:[%s4 + $0x68] sm:$0xff]
        %v1438 = vld [vmem:[%s4 + $0x70] sm:$0xff]
        %v1439 = vld [vmem:[%s4 + $0x78] sm:$0xff]
        %v1440 = vld [vmem:[%s4 + $0x80] sm:$0xff]
        %v1441 = vld [vmem:[%s4 + $0x88] sm:$0xff]
        %v1442 = vld [vmem:[%s4 + $0x90] sm:$0xff]
        %v1443 = vld [vmem:[%s4 + $0x98] sm:$0xff]
        %v1444 = vld [vmem:[%s4 + $0xa0] sm:$0xff]
        %v1445 = vld [vmem:[%s4 + $0xa8] sm:$0xff]
        %v1446 = vld [vmem:[%s4 + $0xb0] sm:$0xff]
        %v1447 = vld [vmem:[%s4 + $0xb8] sm:$0xff]
        %v1448 = vld [vmem:[%s4 + $0xc0] sm:$0xff]
        %v1449 = vld [vmem:[%s4 + $0xc8] sm:$0xff]
        %v1450 = vld [vmem:[%s4 + $0xd0] sm:$0xff]
        %v1451 = vld [vmem:[%s4 + $0xd8] sm:$0xff]
        %v1452 = vld [vmem:[%s4 + $0xe0] sm:$0xff]
        %v1453 = vld [vmem:[%s4 + $0xe8] sm:$0xff]
        %v1454 = vld [vmem:[%s4 + $0xf0] sm:$0xff]
        %v1455 = vld [vmem:[%s4 + $0xf8] sm:$0xff]
        %v1456 = vld [vmem:[%s4 + $0x100] sm:$0xff]
        %v1457 = vld [vmem:[%s4 + $0x108] sm:$0xff]
        %v1458 = vld [vmem:[%s4 + $0x110] sm:$0xff]
        %v1459 = vld [vmem:[%s4 + $0x118] sm:$0xff]
        %v1460 = vld [vmem:[%s4 + $0x120] sm:$0xff]
        %v1461 = vld [vmem:[%s4 + $0x128] sm:$0xff]
        %v1462 = vld [vmem:[%s4 + $0x130] sm:$0xff]
        %v1463 = vld [vmem:[%s4 + $0x138] sm:$0xff]
        %v1464 = vld [vmem:[%s4 + $0x140] sm:$0xff]
        %v1465 = vld [vmem:[%s4 + $0x148] sm:$0xff]
        %v1466 = vld [vmem:[%s4 + $0x150] sm:$0xff]
        %v1467 = vld [vmem:[%s4 + $0x158] sm:$0xff]
        %v1468 = vld [vmem:[%s4 + $0x160] sm:$0xff]
        %v1469 = vld [vmem:[%s4 + $0x168] sm:$0xff]
        %v1470 = vld [vmem:[%s4 + $0x170] sm:$0xff]
        %v1471 = vld [vmem:[%s4 + $0x178] sm:$0xff]
        %v1472 = vld [vmem:[%s4 + $0x180] sm:$0xff]
        %v1473 = vld [vmem:[%s4 + $0x188] sm:$0xff]
        %v1474 = vld [vmem:[%s4 + $0x190] sm:$0xff]
        %v1475 = vld [vmem:[%s4 + $0x198] sm:$0xff]
        %v1476 = vld [vmem:[%s4 + $0x1a0] sm:$0xff]
        %v1477 = vld [vmem:[%s4 + $0x1a8] sm:$0xff]
        %v1478 = vld [vmem:[%s4 + $0x1b0] sm:$0xff]
        %v1479 = vld [vmem:[%s4 + $0x1b8] sm:$0xff]
        %v1480 = vld [vmem:[%s4 + $0x1c0] sm:$0xff]
        %v1481 = vld [vmem:[%s4 + $0x1c8] sm:$0xff]
        %v1482 = vld [vmem:[%s4 + $0x1d0] sm:$0xff]
        %v1483 = vld [vmem:[%s4 + $0x1d8] sm:$0xff]
        %v1484 = vld [vmem:[%s4 + $0x1e0] sm:$0xff]
        %v1485 = vld [vmem:[%s4 + $0x1e8] sm:$0xff]
        %v1486 = vld [vmem:[%s4 + $0x1f0] sm:$0xff]
        %v1487 = vld [vmem:[%s4 + $0x1f8] sm:$0xff]
        %v1488 = vmul.f32 %v1216, %v1424
        %v1489 = vmul.f32 %v1329, %v1425
        %v1490 = vmul.f32 %v1219, %v1426
        %v1491 = vmul.f32 %v1332, %v1427
        %v1492 = vmul.f32 %v1222, %v1428
        %v1493 = vmul.f32 %v1335, %v1429
        %v1494 = vmul.f32 %v1225, %v1430
        %v1495 = vmul.f32 %v1338, %v1431
        %v1496 = vmul.f32 %v1228, %v1432
        %v1497 = vmul.f32 %v1341, %v1433
        %v1498 = vmul.f32 %v1231, %v1434
        %v1499 = vmul.f32 %v1344, %v1435
        %v1500 = vmul.f32 %v1234, %v1436
        %v1501 = vmul.f32 %v1347, %v1437
        %v1502 = vmul.f32 %v1237, %v1438
        %v1503 = vmul.f32 %v1350, %v1439
        %v1504 = vmul.f32 %v1240, %v1440
        %v1505 = vmul.f32 %v1353, %v1441
        %v1506 = vmul.f32 %v1243, %v1442
        %v1507 = vmul.f32 %v1356, %v1443
        %v1508 = vmul.f32 %v1246, %v1444
        %v1509 = vmul.f32 %v1359, %v1445
        %v1510 = vmul.f32 %v1249, %v1446
        %v1511 = vmul.f32 %v1362, %v1447
        %v1512 = vmul.f32 %v1252, %v1448
        %v1513 = vmul.f32 %v1365, %v1449
        %v1514 = vmul.f32 %v1255, %v1450
        %v1515 = vmul.f32 %v1368, %v1451
        %v1516 = vmul.f32 %v1258, %v1452
        %v1517 = vmul.f32 %v1371, %v1453
        %v1518 = vmul.f32 %v1261, %v1454
        %v1519 = vmul.f32 %v1374, %v1455
        %v1520 = vmul.f32 %v1264, %v1456
        %v1521 = vmul.f32 %v1377, %v1457
        %v1522 = vmul.f32 %v1267, %v1458
        %v1523 = vmul.f32 %v1380, %v1459
        %v1524 = vmul.f32 %v1270, %v1460
        %v1525 = vmul.f32 %v1383, %v1461
        %v1526 = vmul.f32 %v1273, %v1462
        %v1527 = vmul.f32 %v1386, %v1463
        %v1528 = vmul.f32 %v1276, %v1464
        %v1529 = vmul.f32 %v1389, %v1465
        %v1530 = vmul.f32 %v1279, %v1466
        %v1531 = vmul.f32 %v1392, %v1467
        %v1532 = vmul.f32 %v1282, %v1468
        %v1533 = vmul.f32 %v1395, %v1469
        %v1534 = vmul.f32 %v1285, %v1470
        %v1535 = vmul.f32 %v1398, %v1471
        %v1536 = vmul.f32 %v1288, %v1472
        %v1537 = vmul.f32 %v1401, %v1473
        %v1538 = vmul.f32 %v1291, %v1474
        %v1539 = vmul.f32 %v1404, %v1475
        %v1540 = vmul.f32 %v1294, %v1476
        %v1541 = vmul.f32 %v1407, %v1477
        %v1542 = vmul.f32 %v1297, %v1478
        %v1543 = vmul.f32 %v1410, %v1479
        %v1544 = vmul.f32 %v1300, %v1480
        %v1545 = vmul.f32 %v1413, %v1481
        %v1546 = vmul.f32 %v1303, %v1482
        %v1547 = vmul.f32 %v1416, %v1483
        %v1548 = vmul.f32 %v1306, %v1484
        %v1549 = vmul.f32 %v1419, %v1485
        %v1550 = vmul.f32 %v1309, %v1486
        %v1551 = vmul.f32 %v1422, %v1487
        %v1552 = vld [vmem:[%s479] sm:$0xff]
        %v1553 = vld [vmem:[%s479 + $0x8] sm:$0xff]
        %v1554 = vld [vmem:[%s479 + $0x10] sm:$0xff]
        %v1555 = vld [vmem:[%s479 + $0x18] sm:$0xff]
        %v1556 = vld [vmem:[%s479 + $0x20] sm:$0xff]
        %v1557 = vld [vmem:[%s479 + $0x28] sm:$0xff]
        %v1558 = vld [vmem:[%s479 + $0x30] sm:$0xff]
        %v1559 = vld [vmem:[%s479 + $0x38] sm:$0xff]
        %v1560 = vld [vmem:[%s479 + $0x40] sm:$0xff]
        %v1561 = vld [vmem:[%s479 + $0x48] sm:$0xff]
        %v1562 = vld [vmem:[%s479 + $0x50] sm:$0xff]
        %v1563 = vld [vmem:[%s479 + $0x58] sm:$0xff]
        %v1564 = vld [vmem:[%s479 + $0x60] sm:$0xff]
        %v1565 = vld [vmem:[%s479 + $0x68] sm:$0xff]
        %v1566 = vld [vmem:[%s479 + $0x70] sm:$0xff]
        %v1567 = vld [vmem:[%s479 + $0x78] sm:$0xff]
        %v1568 = vld [vmem:[%s479 + $0x80] sm:$0xff]
        %v1569 = vld [vmem:[%s479 + $0x88] sm:$0xff]
        %v1570 = vld [vmem:[%s479 + $0x90] sm:$0xff]
        %v1571 = vld [vmem:[%s479 + $0x98] sm:$0xff]
        %v1572 = vld [vmem:[%s479 + $0xa0] sm:$0xff]
        %v1573 = vld [vmem:[%s479 + $0xa8] sm:$0xff]
        %v1574 = vld [vmem:[%s479 + $0xb0] sm:$0xff]
        %v1575 = vld [vmem:[%s479 + $0xb8] sm:$0xff]
        %v1576 = vld [vmem:[%s479 + $0xc0] sm:$0xff]
        %v1577 = vld [vmem:[%s479 + $0xc8] sm:$0xff]
        %v1578 = vld [vmem:[%s479 + $0xd0] sm:$0xff]
        %v1579 = vld [vmem:[%s479 + $0xd8] sm:$0xff]
        %v1580 = vld [vmem:[%s479 + $0xe0] sm:$0xff]
        %v1581 = vld [vmem:[%s479 + $0xe8] sm:$0xff]
        %v1582 = vld [vmem:[%s479 + $0xf0] sm:$0xff]
        %v1583 = vld [vmem:[%s479 + $0xf8] sm:$0xff]
        %v1584 = vld [vmem:[%s5] sm:$0xff]
        %vm1585 = vcmask 64512
        %v1587 = vsel %vm1585, %v1552, 0
        %v1590 = vsel %vm1585, %v1553, 0
        %v1593 = vsel %vm1585, %v1554, 0
        %v1596 = vsel %vm1585, %v1555, 0
        %v1599 = vsel %vm1585, %v1556, 0
        %v1602 = vsel %vm1585, %v1557, 0
        %v1605 = vsel %vm1585, %v1558, 0
        %v1608 = vsel %vm1585, %v1559, 0
        %v1611 = vsel %vm1585, %v1560, 0
        %v1614 = vsel %vm1585, %v1561, 0
        %v1617 = vsel %vm1585, %v1562, 0
        %v1620 = vsel %vm1585, %v1563, 0
        %v1623 = vsel %vm1585, %v1564, 0
        %v1626 = vsel %vm1585, %v1565, 0
        %v1629 = vsel %vm1585, %v1566, 0
        %v1632 = vsel %vm1585, %v1567, 0
        %v1635 = vsel %vm1585, %v1568, 0
        %v1638 = vsel %vm1585, %v1569, 0
        %v1641 = vsel %vm1585, %v1570, 0
        %v1644 = vsel %vm1585, %v1571, 0
        %v1647 = vsel %vm1585, %v1572, 0
        %v1650 = vsel %vm1585, %v1573, 0
        %v1653 = vsel %vm1585, %v1574, 0
        %v1656 = vsel %vm1585, %v1575, 0
        %v1659 = vsel %vm1585, %v1576, 0
        %v1662 = vsel %vm1585, %v1577, 0
        %v1665 = vsel %vm1585, %v1578, 0
        %v1668 = vsel %vm1585, %v1579, 0
        %v1671 = vsel %vm1585, %v1580, 0
        %v1674 = vsel %vm1585, %v1581, 0
        %v1677 = vsel %vm1585, %v1582, 0
        %v1680 = vsel %vm1585, %v1583, 0
        %1682 = vmatpush.msra.mxu0 0.0
        %1683 = vmatpush.msra.mxu0 0.0
        %1684 = vmatpush.msra.mxu0 0.0
        %1685 = vmatpush.msra.mxu0 0.0
        %1686 = vmatpush.msra.mxu0 0.0
        %1687 = vmatpush.msra.mxu0 0.0
        %1688 = vmatpush.msra.mxu0 0.0
        %1689 = vmatpush.msra.mxu0 0.0
        %1690 = vmatpush.msra.mxu0 0.0
        %1691 = vmatpush.msra.mxu0 0.0
        %1692 = vmatpush.msra.mxu0 0.0
        %1693 = vmatpush.msra.mxu0 0.0
        %1694 = vmatpush.msra.mxu0 0.0
        %1695 = vmatpush.msra.mxu0 0.0
        %1696 = vmatpush.msra.mxu0 0.0
        %1697 = vmatpush.msra.mxu0 %v1584
        %1698 = vmatmul.f32.gmra.mxu0 %v1587
        %v1699 = vpop.f32.mrf.mxu0
        %v1700 = vadd.f32 0.0, %v1699
        %1701 = vmatmul.f32.gmra.mxu0 %v1590
        %v1702 = vpop.f32.mrf.mxu0
        %v1703 = vadd.f32 0.0, %v1702
        %1704 = vmatmul.f32.gmra.mxu0 %v1593
        %v1705 = vpop.f32.mrf.mxu0
        %v1706 = vadd.f32 0.0, %v1705
        %1707 = vmatmul.f32.gmra.mxu0 %v1596
        %v1708 = vpop.f32.mrf.mxu0
        %v1709 = vadd.f32 0.0, %v1708
        %1710 = vmatmul.f32.gmra.mxu0 %v1599
        %v1711 = vpop.f32.mrf.mxu0
        %v1712 = vadd.f32 0.0, %v1711
        %1713 = vmatmul.f32.gmra.mxu0 %v1602
        %v1714 = vpop.f32.mrf.mxu0
        %v1715 = vadd.f32 0.0, %v1714
        %1716 = vmatmul.f32.gmra.mxu0 %v1605
        %v1717 = vpop.f32.mrf.mxu0
        %v1718 = vadd.f32 0.0, %v1717
        %1719 = vmatmul.f32.gmra.mxu0 %v1608
        %v1720 = vpop.f32.mrf.mxu0
        %v1721 = vadd.f32 0.0, %v1720
        %1722 = vmatmul.f32.gmra.mxu0 %v1611
        %v1723 = vpop.f32.mrf.mxu0
        %v1724 = vadd.f32 0.0, %v1723
        %1725 = vmatmul.f32.gmra.mxu0 %v1614
        %v1726 = vpop.f32.mrf.mxu0
        %v1727 = vadd.f32 0.0, %v1726
        %1728 = vmatmul.f32.gmra.mxu0 %v1617
        %v1729 = vpop.f32.mrf.mxu0
        %v1730 = vadd.f32 0.0, %v1729
        %1731 = vmatmul.f32.gmra.mxu0 %v1620
        %v1732 = vpop.f32.mrf.mxu0
        %v1733 = vadd.f32 0.0, %v1732
        %1734 = vmatmul.f32.gmra.mxu0 %v1623
        %v1735 = vpop.f32.mrf.mxu0
        %v1736 = vadd.f32 0.0, %v1735
        %1737 = vmatmul.f32.gmra.mxu0 %v1626
        %v1738 = vpop.f32.mrf.mxu0
        %v1739 = vadd.f32 0.0, %v1738
        %1740 = vmatmul.f32.gmra.mxu0 %v1629
        %v1741 = vpop.f32.mrf.mxu0
        %v1742 = vadd.f32 0.0, %v1741
        %1743 = vmatmul.f32.gmra.mxu0 %v1632
        %v1744 = vpop.f32.mrf.mxu0
        %v1745 = vadd.f32 0.0, %v1744
        %1746 = vmatmul.f32.gmra.mxu0 %v1635
        %v1747 = vpop.f32.mrf.mxu0
        %v1748 = vadd.f32 0.0, %v1747
        %1749 = vmatmul.f32.gmra.mxu0 %v1638
        %v1750 = vpop.f32.mrf.mxu0
        %v1751 = vadd.f32 0.0, %v1750
        %1752 = vmatmul.f32.gmra.mxu0 %v1641
        %v1753 = vpop.f32.mrf.mxu0
        %v1754 = vadd.f32 0.0, %v1753
        %1755 = vmatmul.f32.gmra.mxu0 %v1644
        %v1756 = vpop.f32.mrf.mxu0
        %v1757 = vadd.f32 0.0, %v1756
        %1758 = vmatmul.f32.gmra.mxu0 %v1647
        %v1759 = vpop.f32.mrf.mxu0
        %v1760 = vadd.f32 0.0, %v1759
        %1761 = vmatmul.f32.gmra.mxu0 %v1650
        %v1762 = vpop.f32.mrf.mxu0
        %v1763 = vadd.f32 0.0, %v1762
        %1764 = vmatmul.f32.gmra.mxu0 %v1653
        %v1765 = vpop.f32.mrf.mxu0
        %v1766 = vadd.f32 0.0, %v1765
        %1767 = vmatmul.f32.gmra.mxu0 %v1656
        %v1768 = vpop.f32.mrf.mxu0
        %v1769 = vadd.f32 0.0, %v1768
        %1770 = vmatmul.f32.gmra.mxu0 %v1659
        %v1771 = vpop.f32.mrf.mxu0
        %v1772 = vadd.f32 0.0, %v1771
        %1773 = vmatmul.f32.gmra.mxu0 %v1662
        %v1774 = vpop.f32.mrf.mxu0
        %v1775 = vadd.f32 0.0, %v1774
        %1776 = vmatmul.f32.gmra.mxu0 %v1665
        %v1777 = vpop.f32.mrf.mxu0
        %v1778 = vadd.f32 0.0, %v1777
        %1779 = vmatmul.f32.gmra.mxu0 %v1668
        %v1780 = vpop.f32.mrf.mxu0
        %v1781 = vadd.f32 0.0, %v1780
        %1782 = vmatmul.f32.gmra.mxu0 %v1671
        %v1783 = vpop.f32.mrf.mxu0
        %v1784 = vadd.f32 0.0, %v1783
        %1785 = vmatmul.f32.gmra.mxu0 %v1674
        %v1786 = vpop.f32.mrf.mxu0
        %v1787 = vadd.f32 0.0, %v1786
        %1788 = vmatmul.f32.gmra.mxu0 %v1677
        %v1789 = vpop.f32.mrf.mxu0
        %v1790 = vadd.f32 0.0, %v1789
        %1791 = vmatmul.f32.gmra.mxu0 %v1680
        %v1792 = vpop.f32.mrf.mxu0
        %v1793 = vadd.f32 0.0, %v1792
        %1794 = vdwg.mxu0
        %v1795 = vld [vmem:[%s6] sm:$0x1]
        %v1797 = vperm.slane %v1795, 0
        %1799 = vmatpush.msra.mxu0 %v1745
        %1800 = vmatpush.msra.mxu0 %v1742
        %1801 = vmatpush.msra.mxu0 %v1739
        %1802 = vmatpush.msra.mxu0 %v1736
        %1803 = vmatpush.msra.mxu0 %v1733
        %1804 = vmatpush.msra.mxu0 %v1730
        %1805 = vmatpush.msra.mxu0 %v1727
        %1806 = vmatpush.msra.mxu0 %v1724
        %1807 = vmatpush.msra.mxu0 %v1721
        %1808 = vmatpush.msra.mxu0 %v1718
        %1809 = vmatpush.msra.mxu0 %v1715
        %1810 = vmatpush.msra.mxu0 %v1712
        %1811 = vmatpush.msra.mxu0 %v1709
        %1812 = vmatpush.msra.mxu0 %v1706
        %1813 = vmatpush.msra.mxu0 %v1703
        %1814 = vmatpush.msra.mxu0 %v1700
        %1815 = vmatmul.f32.gmra.mxu0 %v1488
        %v1816 = vpop.f32.mrf.mxu0
        %v1817 = vadd.f32 %v1797, %v1816
        %1818 = vmatmul.f32.gmra.mxu0 %v1490
        %v1819 = vpop.f32.mrf.mxu0
        %v1820 = vadd.f32 %v1797, %v1819
        %1821 = vmatmul.f32.gmra.mxu0 %v1492
        %v1822 = vpop.f32.mrf.mxu0
        %v1823 = vadd.f32 %v1797, %v1822
        %1824 = vmatmul.f32.gmra.mxu0 %v1494
        %v1825 = vpop.f32.mrf.mxu0
        %v1826 = vadd.f32 %v1797, %v1825
        %1827 = vmatmul.f32.gmra.mxu0 %v1496
        %v1828 = vpop.f32.mrf.mxu0
        %v1829 = vadd.f32 %v1797, %v1828
        %1830 = vmatmul.f32.gmra.mxu0 %v1498
        %v1831 = vpop.f32.mrf.mxu0
        %v1832 = vadd.f32 %v1797, %v1831
        %1833 = vmatmul.f32.gmra.mxu0 %v1500
        %v1834 = vpop.f32.mrf.mxu0
        %v1835 = vadd.f32 %v1797, %v1834
        %1836 = vmatmul.f32.gmra.mxu0 %v1502
        %v1837 = vpop.f32.mrf.mxu0
        %v1838 = vadd.f32 %v1797, %v1837
        %1839 = vmatmul.f32.gmra.mxu0 %v1504
        %v1840 = vpop.f32.mrf.mxu0
        %v1841 = vadd.f32 %v1797, %v1840
        %1842 = vmatmul.f32.gmra.mxu0 %v1506
        %v1843 = vpop.f32.mrf.mxu0
        %v1844 = vadd.f32 %v1797, %v1843
        %1845 = vmatmul.f32.gmra.mxu0 %v1508
        %v1846 = vpop.f32.mrf.mxu0
        %v1847 = vadd.f32 %v1797, %v1846
        %1848 = vmatmul.f32.gmra.mxu0 %v1510
        %v1849 = vpop.f32.mrf.mxu0
        %v1850 = vadd.f32 %v1797, %v1849
        %1851 = vmatmul.f32.gmra.mxu0 %v1512
        %v1852 = vpop.f32.mrf.mxu0
        %v1853 = vadd.f32 %v1797, %v1852
        %1854 = vmatmul.f32.gmra.mxu0 %v1514
        %v1855 = vpop.f32.mrf.mxu0
        %v1856 = vadd.f32 %v1797, %v1855
        %1857 = vmatmul.f32.gmra.mxu0 %v1516
        %v1858 = vpop.f32.mrf.mxu0
        %v1859 = vadd.f32 %v1797, %v1858
        %1860 = vmatmul.f32.gmra.mxu0 %v1518
        %v1861 = vpop.f32.mrf.mxu0
        %v1862 = vadd.f32 %v1797, %v1861
        %1863 = vmatmul.f32.gmra.mxu0 %v1520
        %v1864 = vpop.f32.mrf.mxu0
        %v1865 = vadd.f32 %v1797, %v1864
        %1866 = vmatmul.f32.gmra.mxu0 %v1522
        %v1867 = vpop.f32.mrf.mxu0
        %v1868 = vadd.f32 %v1797, %v1867
        %1869 = vmatmul.f32.gmra.mxu0 %v1524
        %v1870 = vpop.f32.mrf.mxu0
        %v1871 = vadd.f32 %v1797, %v1870
        %1872 = vmatmul.f32.gmra.mxu0 %v1526
        %v1873 = vpop.f32.mrf.mxu0
        %v1874 = vadd.f32 %v1797, %v1873
        %1875 = vmatmul.f32.gmra.mxu0 %v1528
        %v1876 = vpop.f32.mrf.mxu0
        %v1877 = vadd.f32 %v1797, %v1876
        %1878 = vmatmul.f32.gmra.mxu0 %v1530
        %v1879 = vpop.f32.mrf.mxu0
        %v1880 = vadd.f32 %v1797, %v1879
        %1881 = vmatmul.f32.gmra.mxu0 %v1532
        %v1882 = vpop.f32.mrf.mxu0
        %v1883 = vadd.f32 %v1797, %v1882
        %1884 = vmatmul.f32.gmra.mxu0 %v1534
        %v1885 = vpop.f32.mrf.mxu0
        %v1886 = vadd.f32 %v1797, %v1885
        %1887 = vmatmul.f32.gmra.mxu0 %v1536
        %v1888 = vpop.f32.mrf.mxu0
        %v1889 = vadd.f32 %v1797, %v1888
        %1890 = vmatmul.f32.gmra.mxu0 %v1538
        %v1891 = vpop.f32.mrf.mxu0
        %v1892 = vadd.f32 %v1797, %v1891
        %1893 = vmatmul.f32.gmra.mxu0 %v1540
        %v1894 = vpop.f32.mrf.mxu0
        %v1895 = vadd.f32 %v1797, %v1894
        %1896 = vmatmul.f32.gmra.mxu0 %v1542
        %v1897 = vpop.f32.mrf.mxu0
        %v1898 = vadd.f32 %v1797, %v1897
        %1899 = vmatmul.f32.gmra.mxu0 %v1544
        %v1900 = vpop.f32.mrf.mxu0
        %v1901 = vadd.f32 %v1797, %v1900
        %1902 = vmatmul.f32.gmra.mxu0 %v1546
        %v1903 = vpop.f32.mrf.mxu0
        %v1904 = vadd.f32 %v1797, %v1903
        %1905 = vmatmul.f32.gmra.mxu0 %v1548
        %v1906 = vpop.f32.mrf.mxu0
        %v1907 = vadd.f32 %v1797, %v1906
        %1908 = vmatmul.f32.gmra.mxu0 %v1550
        %v1909 = vpop.f32.mrf.mxu0
        %v1910 = vadd.f32 %v1797, %v1909
        %1911 = vdwg.mxu0
        %1912 = vmatpush.msra.mxu0 %v1793
        %1913 = vmatpush.msra.mxu0 %v1790
        %1914 = vmatpush.msra.mxu0 %v1787
        %1915 = vmatpush.msra.mxu0 %v1784
        %1916 = vmatpush.msra.mxu0 %v1781
        %1917 = vmatpush.msra.mxu0 %v1778
        %1918 = vmatpush.msra.mxu0 %v1775
        %1919 = vmatpush.msra.mxu0 %v1772
        %1920 = vmatpush.msra.mxu0 %v1769
        %1921 = vmatpush.msra.mxu0 %v1766
        %1922 = vmatpush.msra.mxu0 %v1763
        %1923 = vmatpush.msra.mxu0 %v1760
        %1924 = vmatpush.msra.mxu0 %v1757
        %1925 = vmatpush.msra.mxu0 %v1754
        %1926 = vmatpush.msra.mxu0 %v1751
        %1927 = vmatpush.msra.mxu0 %v1748
        %1928 = vmatmul.f32.gmra.mxu0 %v1489
        %v1929 = vpop.f32.mrf.mxu0
        %v1930 = vadd.f32 %v1817, %v1929
        %1931 = vmatmul.f32.gmra.mxu0 %v1491
        %v1932 = vpop.f32.mrf.mxu0
        %v1933 = vadd.f32 %v1820, %v1932
        %1934 = vmatmul.f32.gmra.mxu0 %v1493
        %v1935 = vpop.f32.mrf.mxu0
        %v1936 = vadd.f32 %v1823, %v1935
        %1937 = vmatmul.f32.gmra.mxu0 %v1495
        %v1938 = vpop.f32.mrf.mxu0
        %v1939 = vadd.f32 %v1826, %v1938
        %1940 = vmatmul.f32.gmra.mxu0 %v1497
        %v1941 = vpop.f32.mrf.mxu0
        %v1942 = vadd.f32 %v1829, %v1941
        %1943 = vmatmul.f32.gmra.mxu0 %v1499
        %v1944 = vpop.f32.mrf.mxu0
        %v1945 = vadd.f32 %v1832, %v1944
        %1946 = vmatmul.f32.gmra.mxu0 %v1501
        %v1947 = vpop.f32.mrf.mxu0
        %v1948 = vadd.f32 %v1835, %v1947
        %1949 = vmatmul.f32.gmra.mxu0 %v1503
        %v1950 = vpop.f32.mrf.mxu0
        %v1951 = vadd.f32 %v1838, %v1950
        %1952 = vmatmul.f32.gmra.mxu0 %v1505
        %v1953 = vpop.f32.mrf.mxu0
        %v1954 = vadd.f32 %v1841, %v1953
        %1955 = vmatmul.f32.gmra.mxu0 %v1507
        %v1956 = vpop.f32.mrf.mxu0
        %v1957 = vadd.f32 %v1844, %v1956
        %1958 = vmatmul.f32.gmra.mxu0 %v1509
        %v1959 = vpop.f32.mrf.mxu0
        %v1960 = vadd.f32 %v1847, %v1959
        %1961 = vmatmul.f32.gmra.mxu0 %v1511
        %v1962 = vpop.f32.mrf.mxu0
        %v1963 = vadd.f32 %v1850, %v1962
        %1964 = vmatmul.f32.gmra.mxu0 %v1513
        %v1965 = vpop.f32.mrf.mxu0
        %v1966 = vadd.f32 %v1853, %v1965
        %1967 = vmatmul.f32.gmra.mxu0 %v1515
        %v1968 = vpop.f32.mrf.mxu0
        %v1969 = vadd.f32 %v1856, %v1968
        %1970 = vmatmul.f32.gmra.mxu0 %v1517
        %v1971 = vpop.f32.mrf.mxu0
        %v1972 = vadd.f32 %v1859, %v1971
        %1973 = vmatmul.f32.gmra.mxu0 %v1519
        %v1974 = vpop.f32.mrf.mxu0
        %v1975 = vadd.f32 %v1862, %v1974
        %1976 = vmatmul.f32.gmra.mxu0 %v1521
        %v1977 = vpop.f32.mrf.mxu0
        %v1978 = vadd.f32 %v1865, %v1977
        %1979 = vmatmul.f32.gmra.mxu0 %v1523
        %v1980 = vpop.f32.mrf.mxu0
        %v1981 = vadd.f32 %v1868, %v1980
        %1982 = vmatmul.f32.gmra.mxu0 %v1525
        %v1983 = vpop.f32.mrf.mxu0
        %v1984 = vadd.f32 %v1871, %v1983
        %1985 = vmatmul.f32.gmra.mxu0 %v1527
        %v1986 = vpop.f32.mrf.mxu0
        %v1987 = vadd.f32 %v1874, %v1986
        %1988 = vmatmul.f32.gmra.mxu0 %v1529
        %v1989 = vpop.f32.mrf.mxu0
        %v1990 = vadd.f32 %v1877, %v1989
        %1991 = vmatmul.f32.gmra.mxu0 %v1531
        %v1992 = vpop.f32.mrf.mxu0
        %v1993 = vadd.f32 %v1880, %v1992
        %1994 = vmatmul.f32.gmra.mxu0 %v1533
        %v1995 = vpop.f32.mrf.mxu0
        %v1996 = vadd.f32 %v1883, %v1995
        %1997 = vmatmul.f32.gmra.mxu0 %v1535
        %v1998 = vpop.f32.mrf.mxu0
        %v1999 = vadd.f32 %v1886, %v1998
        %2000 = vmatmul.f32.gmra.mxu0 %v1537
        %v2001 = vpop.f32.mrf.mxu0
        %v2002 = vadd.f32 %v1889, %v2001
        %2003 = vmatmul.f32.gmra.mxu0 %v1539
        %v2004 = vpop.f32.mrf.mxu0
        %v2005 = vadd.f32 %v1892, %v2004
        %2006 = vmatmul.f32.gmra.mxu0 %v1541
        %v2007 = vpop.f32.mrf.mxu0
        %v2008 = vadd.f32 %v1895, %v2007
        %2009 = vmatmul.f32.gmra.mxu0 %v1543
        %v2010 = vpop.f32.mrf.mxu0
        %v2011 = vadd.f32 %v1898, %v2010
        %2012 = vmatmul.f32.gmra.mxu0 %v1545
        %v2013 = vpop.f32.mrf.mxu0
        %v2014 = vadd.f32 %v1901, %v2013
        %2015 = vmatmul.f32.gmra.mxu0 %v1547
        %v2016 = vpop.f32.mrf.mxu0
        %v2017 = vadd.f32 %v1904, %v2016
        %2018 = vmatmul.f32.gmra.mxu0 %v1549
        %v2019 = vpop.f32.mrf.mxu0
        %v2020 = vadd.f32 %v1907, %v2019
        %2021 = vmatmul.f32.gmra.mxu0 %v1551
        %v2022 = vpop.f32.mrf.mxu0
        %v2023 = vadd.f32 %v1910, %v2022
        %2024 = vdwg.mxu0
        %v2025 = vmax.f32 %v1930, 0.0
        %v2026 = vmax.f32 %v1933, 0.0
        %v2027 = vmax.f32 %v1936, 0.0
        %v2028 = vmax.f32 %v1939, 0.0
        %v2029 = vmax.f32 %v1942, 0.0
        %v2030 = vmax.f32 %v1945, 0.0
        %v2031 = vmax.f32 %v1948, 0.0
        %v2032 = vmax.f32 %v1951, 0.0
        %v2033 = vmax.f32 %v1954, 0.0
        %v2034 = vmax.f32 %v1957, 0.0
        %v2035 = vmax.f32 %v1960, 0.0
        %v2036 = vmax.f32 %v1963, 0.0
        %v2037 = vmax.f32 %v1966, 0.0
        %v2038 = vmax.f32 %v1969, 0.0
        %v2039 = vmax.f32 %v1972, 0.0
        %v2040 = vmax.f32 %v1975, 0.0
        %v2041 = vmax.f32 %v1978, 0.0
        %v2042 = vmax.f32 %v1981, 0.0
        %v2043 = vmax.f32 %v1984, 0.0
        %v2044 = vmax.f32 %v1987, 0.0
        %v2045 = vmax.f32 %v1990, 0.0
        %v2046 = vmax.f32 %v1993, 0.0
        %v2047 = vmax.f32 %v1996, 0.0
        %v2048 = vmax.f32 %v1999, 0.0
        %v2049 = vmax.f32 %v2002, 0.0
        %v2050 = vmax.f32 %v2005, 0.0
        %v2051 = vmax.f32 %v2008, 0.0
        %v2052 = vmax.f32 %v2011, 0.0
        %v2053 = vmax.f32 %v2014, 0.0
        %v2054 = vmax.f32 %v2017, 0.0
        %v2055 = vmax.f32 %v2020, 0.0
        %v2056 = vmax.f32 %v2023, 0.0
        %v2057 = vld [vmem:[%s7] sm:$0xff]
        %v2058 = vld [vmem:[%s7 + $0x8] sm:$0xff]
        %v2059 = vld [vmem:[%s7 + $0x10] sm:$0xff]
        %v2060 = vld [vmem:[%s7 + $0x18] sm:$0xff]
        %vm2061 = vcmask 261120
        %v2063 = vsel %vm2061, %v2025, 0
        %v2066 = vsel %vm2061, %v2026, 0
        %v2069 = vsel %vm2061, %v2027, 0
        %v2072 = vsel %vm2061, %v2028, 0
        %v2075 = vsel %vm2061, %v2029, 0
        %v2078 = vsel %vm2061, %v2030, 0
        %v2081 = vsel %vm2061, %v2031, 0
        %v2084 = vsel %vm2061, %v2032, 0
        %v2087 = vsel %vm2061, %v2033, 0
        %v2090 = vsel %vm2061, %v2034, 0
        %v2093 = vsel %vm2061, %v2035, 0
        %v2096 = vsel %vm2061, %v2036, 0
        %v2099 = vsel %vm2061, %v2037, 0
        %v2102 = vsel %vm2061, %v2038, 0
        %v2105 = vsel %vm2061, %v2039, 0
        %v2108 = vsel %vm2061, %v2040, 0
        %v2111 = vsel %vm2061, %v2041, 0
        %v2114 = vsel %vm2061, %v2042, 0
        %v2117 = vsel %vm2061, %v2043, 0
        %v2120 = vsel %vm2061, %v2044, 0
        %v2123 = vsel %vm2061, %v2045, 0
        %v2126 = vsel %vm2061, %v2046, 0
        %v2129 = vsel %vm2061, %v2047, 0
        %v2132 = vsel %vm2061, %v2048, 0
        %v2135 = vsel %vm2061, %v2049, 0
        %v2138 = vsel %vm2061, %v2050, 0
        %v2141 = vsel %vm2061, %v2051, 0
        %v2144 = vsel %vm2061, %v2052, 0
        %v2147 = vsel %vm2061, %v2053, 0
        %v2150 = vsel %vm2061, %v2054, 0
        %v2153 = vsel %vm2061, %v2055, 0
        %v2156 = vsel %vm2061, %v2056, 0
        %2158 = vmatpush.msra.mxu0 0.0
        %2159 = vmatpush.msra.mxu0 0.0
        %2160 = vmatpush.msra.mxu0 0.0
        %2161 = vmatpush.msra.mxu0 0.0
        %2162 = vmatpush.msra.mxu0 0.0
        %2163 = vmatpush.msra.mxu0 0.0
        %2164 = vmatpush.msra.mxu0 0.0
        %2165 = vmatpush.msra.mxu0 0.0
        %2166 = vmatpush.msra.mxu0 0.0
        %2167 = vmatpush.msra.mxu0 0.0
        %2168 = vmatpush.msra.mxu0 0.0
        %2169 = vmatpush.msra.mxu0 0.0
        %2170 = vmatpush.msra.mxu0 %v2060
        %2171 = vmatpush.msra.mxu0 %v2059
        %2172 = vmatpush.msra.mxu0 %v2058
        %2173 = vmatpush.msra.mxu0 %v2057
        %2174 = vmatmul.f32.gmra.mxu0 %v2063
        %v2175 = vpop.f32.mrf.mxu0
        %v2176 = vadd.f32 0.0, %v2175
        %2177 = vmatmul.f32.gmra.mxu0 %v2066
        %v2178 = vpop.f32.mrf.mxu0
        %v2179 = vadd.f32 0.0, %v2178
        %2180 = vmatmul.f32.gmra.mxu0 %v2069
        %v2181 = vpop.f32.mrf.mxu0
        %v2182 = vadd.f32 0.0, %v2181
        %2183 = vmatmul.f32.gmra.mxu0 %v2072
        %v2184 = vpop.f32.mrf.mxu0
        %v2185 = vadd.f32 0.0, %v2184
        %2186 = vmatmul.f32.gmra.mxu0 %v2075
        %v2187 = vpop.f32.mrf.mxu0
        %v2188 = vadd.f32 0.0, %v2187
        %2189 = vmatmul.f32.gmra.mxu0 %v2078
        %v2190 = vpop.f32.mrf.mxu0
        %v2191 = vadd.f32 0.0, %v2190
        %2192 = vmatmul.f32.gmra.mxu0 %v2081
        %v2193 = vpop.f32.mrf.mxu0
        %v2194 = vadd.f32 0.0, %v2193
        %2195 = vmatmul.f32.gmra.mxu0 %v2084
        %v2196 = vpop.f32.mrf.mxu0
        %v2197 = vadd.f32 0.0, %v2196
        %2198 = vmatmul.f32.gmra.mxu0 %v2087
        %v2199 = vpop.f32.mrf.mxu0
        %v2200 = vadd.f32 0.0, %v2199
        %2201 = vmatmul.f32.gmra.mxu0 %v2090
        %v2202 = vpop.f32.mrf.mxu0
        %v2203 = vadd.f32 0.0, %v2202
        %2204 = vmatmul.f32.gmra.mxu0 %v2093
        %v2205 = vpop.f32.mrf.mxu0
        %v2206 = vadd.f32 0.0, %v2205
        %2207 = vmatmul.f32.gmra.mxu0 %v2096
        %v2208 = vpop.f32.mrf.mxu0
        %v2209 = vadd.f32 0.0, %v2208
        %2210 = vmatmul.f32.gmra.mxu0 %v2099
        %v2211 = vpop.f32.mrf.mxu0
        %v2212 = vadd.f32 0.0, %v2211
        %2213 = vmatmul.f32.gmra.mxu0 %v2102
        %v2214 = vpop.f32.mrf.mxu0
        %v2215 = vadd.f32 0.0, %v2214
        %2216 = vmatmul.f32.gmra.mxu0 %v2105
        %v2217 = vpop.f32.mrf.mxu0
        %v2218 = vadd.f32 0.0, %v2217
        %2219 = vmatmul.f32.gmra.mxu0 %v2108
        %v2220 = vpop.f32.mrf.mxu0
        %v2221 = vadd.f32 0.0, %v2220
        %2222 = vmatmul.f32.gmra.mxu0 %v2111
        %v2223 = vpop.f32.mrf.mxu0
        %v2224 = vadd.f32 0.0, %v2223
        %2225 = vmatmul.f32.gmra.mxu0 %v2114
        %v2226 = vpop.f32.mrf.mxu0
        %v2227 = vadd.f32 0.0, %v2226
        %2228 = vmatmul.f32.gmra.mxu0 %v2117
        %v2229 = vpop.f32.mrf.mxu0
        %v2230 = vadd.f32 0.0, %v2229
        %2231 = vmatmul.f32.gmra.mxu0 %v2120
        %v2232 = vpop.f32.mrf.mxu0
        %v2233 = vadd.f32 0.0, %v2232
        %2234 = vmatmul.f32.gmra.mxu0 %v2123
        %v2235 = vpop.f32.mrf.mxu0
        %v2236 = vadd.f32 0.0, %v2235
        %2237 = vmatmul.f32.gmra.mxu0 %v2126
        %v2238 = vpop.f32.mrf.mxu0
        %v2239 = vadd.f32 0.0, %v2238
        %2240 = vmatmul.f32.gmra.mxu0 %v2129
        %v2241 = vpop.f32.mrf.mxu0
        %v2242 = vadd.f32 0.0, %v2241
        %2243 = vmatmul.f32.gmra.mxu0 %v2132
        %v2244 = vpop.f32.mrf.mxu0
        %v2245 = vadd.f32 0.0, %v2244
        %2246 = vmatmul.f32.gmra.mxu0 %v2135
        %v2247 = vpop.f32.mrf.mxu0
        %v2248 = vadd.f32 0.0, %v2247
        %2249 = vmatmul.f32.gmra.mxu0 %v2138
        %v2250 = vpop.f32.mrf.mxu0
        %v2251 = vadd.f32 0.0, %v2250
        %2252 = vmatmul.f32.gmra.mxu0 %v2141
        %v2253 = vpop.f32.mrf.mxu0
        %v2254 = vadd.f32 0.0, %v2253
        %2255 = vmatmul.f32.gmra.mxu0 %v2144
        %v2256 = vpop.f32.mrf.mxu0
        %v2257 = vadd.f32 0.0, %v2256
        %2258 = vmatmul.f32.gmra.mxu0 %v2147
        %v2259 = vpop.f32.mrf.mxu0
        %v2260 = vadd.f32 0.0, %v2259
        %2261 = vmatmul.f32.gmra.mxu0 %v2150
        %v2262 = vpop.f32.mrf.mxu0
        %v2263 = vadd.f32 0.0, %v2262
        %2264 = vmatmul.f32.gmra.mxu0 %v2153
        %v2265 = vpop.f32.mrf.mxu0
        %v2266 = vadd.f32 0.0, %v2265
        %2267 = vmatmul.f32.gmra.mxu0 %v2156
        %v2268 = vpop.f32.mrf.mxu0
        %v2269 = vadd.f32 0.0, %v2268
        %2270 = vdwg.mxu0
        %v2271 = vld [vmem:[%s8] sm:$0x1]
        %v2273 = vperm.slane %v2271, 0
        %2275 = vmatpush.msra.mxu0 %v2221
        %2276 = vmatpush.msra.mxu0 %v2218
        %2277 = vmatpush.msra.mxu0 %v2215
        %2278 = vmatpush.msra.mxu0 %v2212
        %2279 = vmatpush.msra.mxu0 %v2209
        %2280 = vmatpush.msra.mxu0 %v2206
        %2281 = vmatpush.msra.mxu0 %v2203
        %2282 = vmatpush.msra.mxu0 %v2200
        %2283 = vmatpush.msra.mxu0 %v2197
        %2284 = vmatpush.msra.mxu0 %v2194
        %2285 = vmatpush.msra.mxu0 %v2191
        %2286 = vmatpush.msra.mxu0 %v2188
        %2287 = vmatpush.msra.mxu0 %v2185
        %2288 = vmatpush.msra.mxu0 %v2182
        %2289 = vmatpush.msra.mxu0 %v2179
        %2290 = vmatpush.msra.mxu0 %v2176
        %2291 = vmatmul.f32.gmra.mxu0 %v1488
        %v2292 = vpop.f32.mrf.mxu0
        %v2293 = vadd.f32 %v2273, %v2292
        %2294 = vmatmul.f32.gmra.mxu0 %v1490
        %v2295 = vpop.f32.mrf.mxu0
        %v2296 = vadd.f32 %v2273, %v2295
        %2297 = vmatmul.f32.gmra.mxu0 %v1492
        %v2298 = vpop.f32.mrf.mxu0
        %v2299 = vadd.f32 %v2273, %v2298
        %2300 = vmatmul.f32.gmra.mxu0 %v1494
        %v2301 = vpop.f32.mrf.mxu0
        %v2302 = vadd.f32 %v2273, %v2301
        %2303 = vmatmul.f32.gmra.mxu0 %v1496
        %v2304 = vpop.f32.mrf.mxu0
        %v2305 = vadd.f32 %v2273, %v2304
        %2306 = vmatmul.f32.gmra.mxu0 %v1498
        %v2307 = vpop.f32.mrf.mxu0
        %v2308 = vadd.f32 %v2273, %v2307
        %2309 = vmatmul.f32.gmra.mxu0 %v1500
        %v2310 = vpop.f32.mrf.mxu0
        %v2311 = vadd.f32 %v2273, %v2310
        %2312 = vmatmul.f32.gmra.mxu0 %v1502
        %v2313 = vpop.f32.mrf.mxu0
        %v2314 = vadd.f32 %v2273, %v2313
        %2315 = vmatmul.f32.gmra.mxu0 %v1504
        %v2316 = vpop.f32.mrf.mxu0
        %v2317 = vadd.f32 %v2273, %v2316
        %2318 = vmatmul.f32.gmra.mxu0 %v1506
        %v2319 = vpop.f32.mrf.mxu0
        %v2320 = vadd.f32 %v2273, %v2319
        %2321 = vmatmul.f32.gmra.mxu0 %v1508
        %v2322 = vpop.f32.mrf.mxu0
        %v2323 = vadd.f32 %v2273, %v2322
        %2324 = vmatmul.f32.gmra.mxu0 %v1510
        %v2325 = vpop.f32.mrf.mxu0
        %v2326 = vadd.f32 %v2273, %v2325
        %2327 = vmatmul.f32.gmra.mxu0 %v1512
        %v2328 = vpop.f32.mrf.mxu0
        %v2329 = vadd.f32 %v2273, %v2328
        %2330 = vmatmul.f32.gmra.mxu0 %v1514
        %v2331 = vpop.f32.mrf.mxu0
        %v2332 = vadd.f32 %v2273, %v2331
        %2333 = vmatmul.f32.gmra.mxu0 %v1516
        %v2334 = vpop.f32.mrf.mxu0
        %v2335 = vadd.f32 %v2273, %v2334
        %2336 = vmatmul.f32.gmra.mxu0 %v1518
        %v2337 = vpop.f32.mrf.mxu0
        %v2338 = vadd.f32 %v2273, %v2337
        %2339 = vmatmul.f32.gmra.mxu0 %v1520
        %v2340 = vpop.f32.mrf.mxu0
        %v2341 = vadd.f32 %v2273, %v2340
        %2342 = vmatmul.f32.gmra.mxu0 %v1522
        %v2343 = vpop.f32.mrf.mxu0
        %v2344 = vadd.f32 %v2273, %v2343
        %2345 = vmatmul.f32.gmra.mxu0 %v1524
        %v2346 = vpop.f32.mrf.mxu0
        %v2347 = vadd.f32 %v2273, %v2346
        %2348 = vmatmul.f32.gmra.mxu0 %v1526
        %v2349 = vpop.f32.mrf.mxu0
        %v2350 = vadd.f32 %v2273, %v2349
        %2351 = vmatmul.f32.gmra.mxu0 %v1528
        %v2352 = vpop.f32.mrf.mxu0
        %v2353 = vadd.f32 %v2273, %v2352
        %2354 = vmatmul.f32.gmra.mxu0 %v1530
        %v2355 = vpop.f32.mrf.mxu0
        %v2356 = vadd.f32 %v2273, %v2355
        %2357 = vmatmul.f32.gmra.mxu0 %v1532
        %v2358 = vpop.f32.mrf.mxu0
        %v2359 = vadd.f32 %v2273, %v2358
        %2360 = vmatmul.f32.gmra.mxu0 %v1534
        %v2361 = vpop.f32.mrf.mxu0
        %v2362 = vadd.f32 %v2273, %v2361
        %2363 = vmatmul.f32.gmra.mxu0 %v1536
        %v2364 = vpop.f32.mrf.mxu0
        %v2365 = vadd.f32 %v2273, %v2364
        %2366 = vmatmul.f32.gmra.mxu0 %v1538
        %v2367 = vpop.f32.mrf.mxu0
        %v2368 = vadd.f32 %v2273, %v2367
        %2369 = vmatmul.f32.gmra.mxu0 %v1540
        %v2370 = vpop.f32.mrf.mxu0
        %v2371 = vadd.f32 %v2273, %v2370
        %2372 = vmatmul.f32.gmra.mxu0 %v1542
        %v2373 = vpop.f32.mrf.mxu0
        %v2374 = vadd.f32 %v2273, %v2373
        %2375 = vmatmul.f32.gmra.mxu0 %v1544
        %v2376 = vpop.f32.mrf.mxu0
        %v2377 = vadd.f32 %v2273, %v2376
        %2378 = vmatmul.f32.gmra.mxu0 %v1546
        %v2379 = vpop.f32.mrf.mxu0
        %v2380 = vadd.f32 %v2273, %v2379
        %2381 = vmatmul.f32.gmra.mxu0 %v1548
        %v2382 = vpop.f32.mrf.mxu0
        %v2383 = vadd.f32 %v2273, %v2382
        %2384 = vmatmul.f32.gmra.mxu0 %v1550
        %v2385 = vpop.f32.mrf.mxu0
        %v2386 = vadd.f32 %v2273, %v2385
        %2387 = vdwg.mxu0
        %2388 = vmatpush.msra.mxu0 %v2269
        %2389 = vmatpush.msra.mxu0 %v2266
        %2390 = vmatpush.msra.mxu0 %v2263
        %2391 = vmatpush.msra.mxu0 %v2260
        %2392 = vmatpush.msra.mxu0 %v2257
        %2393 = vmatpush.msra.mxu0 %v2254
        %2394 = vmatpush.msra.mxu0 %v2251
        %2395 = vmatpush.msra.mxu0 %v2248
        %2396 = vmatpush.msra.mxu0 %v2245
        %2397 = vmatpush.msra.mxu0 %v2242
        %2398 = vmatpush.msra.mxu0 %v2239
        %2399 = vmatpush.msra.mxu0 %v2236
        %2400 = vmatpush.msra.mxu0 %v2233
        %2401 = vmatpush.msra.mxu0 %v2230
        %2402 = vmatpush.msra.mxu0 %v2227
        %2403 = vmatpush.msra.mxu0 %v2224
        %2404 = vmatmul.f32.gmra.mxu0 %v1489
        %v2405 = vpop.f32.mrf.mxu0
        %v2406 = vadd.f32 %v2293, %v2405
        %2407 = vmatmul.f32.gmra.mxu0 %v1491
        %v2408 = vpop.f32.mrf.mxu0
        %v2409 = vadd.f32 %v2296, %v2408
        %2410 = vmatmul.f32.gmra.mxu0 %v1493
        %v2411 = vpop.f32.mrf.mxu0
        %v2412 = vadd.f32 %v2299, %v2411
        %2413 = vmatmul.f32.gmra.mxu0 %v1495
        %v2414 = vpop.f32.mrf.mxu0
        %v2415 = vadd.f32 %v2302, %v2414
        %2416 = vmatmul.f32.gmra.mxu0 %v1497
        %v2417 = vpop.f32.mrf.mxu0
        %v2418 = vadd.f32 %v2305, %v2417
        %2419 = vmatmul.f32.gmra.mxu0 %v1499
        %v2420 = vpop.f32.mrf.mxu0
        %v2421 = vadd.f32 %v2308, %v2420
        %2422 = vmatmul.f32.gmra.mxu0 %v1501
        %v2423 = vpop.f32.mrf.mxu0
        %v2424 = vadd.f32 %v2311, %v2423
        %2425 = vmatmul.f32.gmra.mxu0 %v1503
        %v2426 = vpop.f32.mrf.mxu0
        %v2427 = vadd.f32 %v2314, %v2426
        %2428 = vmatmul.f32.gmra.mxu0 %v1505
        %v2429 = vpop.f32.mrf.mxu0
        %v2430 = vadd.f32 %v2317, %v2429
        %2431 = vmatmul.f32.gmra.mxu0 %v1507
        %v2432 = vpop.f32.mrf.mxu0
        %v2433 = vadd.f32 %v2320, %v2432
        %2434 = vmatmul.f32.gmra.mxu0 %v1509
        %v2435 = vpop.f32.mrf.mxu0
        %v2436 = vadd.f32 %v2323, %v2435
        %2437 = vmatmul.f32.gmra.mxu0 %v1511
        %v2438 = vpop.f32.mrf.mxu0
        %v2439 = vadd.f32 %v2326, %v2438
        %2440 = vmatmul.f32.gmra.mxu0 %v1513
        %v2441 = vpop.f32.mrf.mxu0
        %v2442 = vadd.f32 %v2329, %v2441
        %2443 = vmatmul.f32.gmra.mxu0 %v1515
        %v2444 = vpop.f32.mrf.mxu0
        %v2445 = vadd.f32 %v2332, %v2444
        %2446 = vmatmul.f32.gmra.mxu0 %v1517
        %v2447 = vpop.f32.mrf.mxu0
        %v2448 = vadd.f32 %v2335, %v2447
        %2449 = vmatmul.f32.gmra.mxu0 %v1519
        %v2450 = vpop.f32.mrf.mxu0
        %v2451 = vadd.f32 %v2338, %v2450
        %2452 = vmatmul.f32.gmra.mxu0 %v1521
        %v2453 = vpop.f32.mrf.mxu0
        %v2454 = vadd.f32 %v2341, %v2453
        %2455 = vmatmul.f32.gmra.mxu0 %v1523
        %v2456 = vpop.f32.mrf.mxu0
        %v2457 = vadd.f32 %v2344, %v2456
        %2458 = vmatmul.f32.gmra.mxu0 %v1525
        %v2459 = vpop.f32.mrf.mxu0
        %v2460 = vadd.f32 %v2347, %v2459
        %2461 = vmatmul.f32.gmra.mxu0 %v1527
        %v2462 = vpop.f32.mrf.mxu0
        %v2463 = vadd.f32 %v2350, %v2462
        %2464 = vmatmul.f32.gmra.mxu0 %v1529
        %v2465 = vpop.f32.mrf.mxu0
        %v2466 = vadd.f32 %v2353, %v2465
        %2467 = vmatmul.f32.gmra.mxu0 %v1531
        %v2468 = vpop.f32.mrf.mxu0
        %v2469 = vadd.f32 %v2356, %v2468
        %2470 = vmatmul.f32.gmra.mxu0 %v1533
        %v2471 = vpop.f32.mrf.mxu0
        %v2472 = vadd.f32 %v2359, %v2471
        %2473 = vmatmul.f32.gmra.mxu0 %v1535
        %v2474 = vpop.f32.mrf.mxu0
        %v2475 = vadd.f32 %v2362, %v2474
        %2476 = vmatmul.f32.gmra.mxu0 %v1537
        %v2477 = vpop.f32.mrf.mxu0
        %v2478 = vadd.f32 %v2365, %v2477
        %2479 = vmatmul.f32.gmra.mxu0 %v1539
        %v2480 = vpop.f32.mrf.mxu0
        %v2481 = vadd.f32 %v2368, %v2480
        %2482 = vmatmul.f32.gmra.mxu0 %v1541
        %v2483 = vpop.f32.mrf.mxu0
        %v2484 = vadd.f32 %v2371, %v2483
        %2485 = vmatmul.f32.gmra.mxu0 %v1543
        %v2486 = vpop.f32.mrf.mxu0
        %v2487 = vadd.f32 %v2374, %v2486
        %2488 = vmatmul.f32.gmra.mxu0 %v1545
        %v2489 = vpop.f32.mrf.mxu0
        %v2490 = vadd.f32 %v2377, %v2489
        %2491 = vmatmul.f32.gmra.mxu0 %v1547
        %v2492 = vpop.f32.mrf.mxu0
        %v2493 = vadd.f32 %v2380, %v2492
        %2494 = vmatmul.f32.gmra.mxu0 %v1549
        %v2495 = vpop.f32.mrf.mxu0
        %v2496 = vadd.f32 %v2383, %v2495
        %2497 = vmatmul.f32.gmra.mxu0 %v1551
        %v2498 = vpop.f32.mrf.mxu0
        %v2499 = vadd.f32 %v2386, %v2498
        %2500 = vdwg.mxu0
        %v2501 = vmax.f32 %v2406, 0.0
        %v2502 = vmax.f32 %v2409, 0.0
        %v2503 = vmax.f32 %v2412, 0.0
        %v2504 = vmax.f32 %v2415, 0.0
        %v2505 = vmax.f32 %v2418, 0.0
        %v2506 = vmax.f32 %v2421, 0.0
        %v2507 = vmax.f32 %v2424, 0.0
        %v2508 = vmax.f32 %v2427, 0.0
        %v2509 = vmax.f32 %v2430, 0.0
        %v2510 = vmax.f32 %v2433, 0.0
        %v2511 = vmax.f32 %v2436, 0.0
        %v2512 = vmax.f32 %v2439, 0.0
        %v2513 = vmax.f32 %v2442, 0.0
        %v2514 = vmax.f32 %v2445, 0.0
        %v2515 = vmax.f32 %v2448, 0.0
        %v2516 = vmax.f32 %v2451, 0.0
        %v2517 = vmax.f32 %v2454, 0.0
        %v2518 = vmax.f32 %v2457, 0.0
        %v2519 = vmax.f32 %v2460, 0.0
        %v2520 = vmax.f32 %v2463, 0.0
        %v2521 = vmax.f32 %v2466, 0.0
        %v2522 = vmax.f32 %v2469, 0.0
        %v2523 = vmax.f32 %v2472, 0.0
        %v2524 = vmax.f32 %v2475, 0.0
        %v2525 = vmax.f32 %v2478, 0.0
        %v2526 = vmax.f32 %v2481, 0.0
        %v2527 = vmax.f32 %v2484, 0.0
        %v2528 = vmax.f32 %v2487, 0.0
        %v2529 = vmax.f32 %v2490, 0.0
        %v2530 = vmax.f32 %v2493, 0.0
        %v2531 = vmax.f32 %v2496, 0.0
        %v2532 = vmax.f32 %v2499, 0.0
        %v2533 = vld [vmem:[%s486] sm:$0xff]
        %v2534 = vld [vmem:[%s486 + $0x8] sm:$0xff]
        %v2535 = vld [vmem:[%s486 + $0x10] sm:$0xff]
        %v2536 = vld [vmem:[%s486 + $0x18] sm:$0xff]
        %2537 = vmatpush.msra.mxu0 %v2516
        %2538 = vmatpush.msra.mxu0 %v2515
        %2539 = vmatpush.msra.mxu0 %v2514
        %2540 = vmatpush.msra.mxu0 %v2513
        %2541 = vmatpush.msra.mxu0 %v2512
        %2542 = vmatpush.msra.mxu0 %v2511
        %2543 = vmatpush.msra.mxu0 %v2510
        %2544 = vmatpush.msra.mxu0 %v2509
        %2545 = vmatpush.msra.mxu0 %v2508
        %2546 = vmatpush.msra.mxu0 %v2507
        %2547 = vmatpush.msra.mxu0 %v2506
        %2548 = vmatpush.msra.mxu0 %v2505
        %2549 = vmatpush.msra.mxu0 %v2504
        %2550 = vmatpush.msra.mxu0 %v2503
        %2551 = vmatpush.msra.mxu0 %v2502
        %2552 = vmatpush.msra.mxu0 %v2501
        %2553 = vmatmul.f32.gmra.mxu0 %v2533
        %v2554 = vpop.f32.mrf.mxu0
        %v2555 = vadd.f32 0.0, %v2554
        %2556 = vmatmul.f32.gmra.mxu0 %v2535
        %v2557 = vpop.f32.mrf.mxu0
        %v2558 = vadd.f32 0.0, %v2557
        %2559 = vdwg.mxu0
        %2560 = vmatpush.msra.mxu0 %v2532
        %2561 = vmatpush.msra.mxu0 %v2531
        %2562 = vmatpush.msra.mxu0 %v2530
        %2563 = vmatpush.msra.mxu0 %v2529
        %2564 = vmatpush.msra.mxu0 %v2528
        %2565 = vmatpush.msra.mxu0 %v2527
        %2566 = vmatpush.msra.mxu0 %v2526
        %2567 = vmatpush.msra.mxu0 %v2525
        %2568 = vmatpush.msra.mxu0 %v2524
        %2569 = vmatpush.msra.mxu0 %v2523
        %2570 = vmatpush.msra.mxu0 %v2522
        %2571 = vmatpush.msra.mxu0 %v2521
        %2572 = vmatpush.msra.mxu0 %v2520
        %2573 = vmatpush.msra.mxu0 %v2519
        %2574 = vmatpush.msra.mxu0 %v2518
        %2575 = vmatpush.msra.mxu0 %v2517
        %2576 = vmatmul.f32.gmra.mxu0 %v2534
        %v2577 = vpop.f32.mrf.mxu0
        %v2578 = vadd.f32 %v2555, %v2577
        %2579 = vmatmul.f32.gmra.mxu0 %v2536
        %v2580 = vpop.f32.mrf.mxu0
        %v2581 = vadd.f32 %v2558, %v2580
        %2582 = vdwg.mxu0
        %v2583 = vld [vmem:[%s9] sm:$0xff]
        %v2584 = vld [vmem:[%s9 + $0x8] sm:$0xff]
        %v2585 = vld [vmem:[%s9 + $0x10] sm:$0xff]
        %v2586 = vld [vmem:[%s9 + $0x18] sm:$0xff]
        %v2587 = vld [vmem:[%s10] sm:$0x1]
        %v2589 = vperm.slane %v2587, 0
        %v2592 = vsel %vm2061, %v2578, 0
        %v2595 = vsel %vm2061, %v2581, 0
        %2597 = vmatpush.msra.mxu0 0.0
        %2598 = vmatpush.msra.mxu0 0.0
        %2599 = vmatpush.msra.mxu0 0.0
        %2600 = vmatpush.msra.mxu0 0.0
        %2601 = vmatpush.msra.mxu0 0.0
        %2602 = vmatpush.msra.mxu0 0.0
        %2603 = vmatpush.msra.mxu0 0.0
        %2604 = vmatpush.msra.mxu0 0.0
        %2605 = vmatpush.msra.mxu0 0.0
        %2606 = vmatpush.msra.mxu0 0.0
        %2607 = vmatpush.msra.mxu0 0.0
        %2608 = vmatpush.msra.mxu0 0.0
        %2609 = vmatpush.msra.mxu0 %v2586
        %2610 = vmatpush.msra.mxu0 %v2585
        %2611 = vmatpush.msra.mxu0 %v2584
        %2612 = vmatpush.msra.mxu0 %v2583
        %2613 = vmatmul.f32.gmra.mxu0 %v2592
        %v2614 = vpop.f32.mrf.mxu0
        %v2615 = vadd.f32 %v2589, %v2614
        %2616 = vmatmul.f32.gmra.mxu0 %v2595
        %v2617 = vpop.f32.mrf.mxu0
        %v2618 = vadd.f32 %v2589, %v2617
        %2619 = vdwg.mxu0
        %v2620 = vmax.f32 %v2615, 0.0
        %v2621 = vmax.f32 %v2618, 0.0
        %v2622 = vld [vmem:[%s11] sm:$0xff]
        %v2623 = vld [vmem:[%s11 + $0x8] sm:$0xff]
        %v2624 = vld [vmem:[%s12] sm:$0x1]
        %v2626 = vperm.slane %v2624, 0
        %v2629 = vsel %vm521, %v2620, 0
        %v2632 = vsel %vm521, %v2621, 0
        %2634 = vmatpush.msra.mxu0 0.0
        %2635 = vmatpush.msra.mxu0 0.0
        %2636 = vmatpush.msra.mxu0 0.0
        %2637 = vmatpush.msra.mxu0 0.0
        %2638 = vmatpush.msra.mxu0 0.0
        %2639 = vmatpush.msra.mxu0 0.0
        %2640 = vmatpush.msra.mxu0 0.0
        %2641 = vmatpush.msra.mxu0 0.0
        %2642 = vmatpush.msra.mxu0 0.0
        %2643 = vmatpush.msra.mxu0 0.0
        %2644 = vmatpush.msra.mxu0 0.0
        %2645 = vmatpush.msra.mxu0 0.0
        %2646 = vmatpush.msra.mxu0 0.0
        %2647 = vmatpush.msra.mxu0 0.0
        %2648 = vmatpush.msra.mxu0 %v2623
        %2649 = vmatpush.msra.mxu0 %v2622
        %2650 = vmatmul.f32.gmra.mxu0 %v2629
        %v2651 = vpop.f32.mrf.mxu0
        %v2652 = vadd.f32 %v2626, %v2651
        %2653 = vmatmul.f32.gmra.mxu0 %v2632
        %v2654 = vpop.f32.mrf.mxu0
        %v2655 = vadd.f32 %v2626, %v2654
        %2656 = vdwg.mxu0
        %2657 = vmax.xlane.f32.xlu0 %v2652
        %v2658 = vpop.xlane.xlu0 %2657
        %2659 = vmax.xlane.f32.xlu0 %v2655
        %v2660 = vpop.xlane.xlu0 %2659
        %v2661 = vsub.f32 %v2652, %v2658
        %v2662 = vsub.f32 %v2655, %v2660
        %v2663 = vmul.f32 %v2661, 1.442695
        %v2664 = vpow.pop %v2663
        %v2665 = vmul.f32 %v2662, 1.442695
        %v2666 = vpow.pop %v2665
        %2667 = vadd.xlane.f32.xlu0 %v2664
        %v2668 = vpop.xlane.xlu0 %2667
        %2669 = vadd.xlane.f32.xlu0 %v2666
        %v2670 = vpop.xlane.xlu0 %2669
        %v2671 = vrcp.pop %v2668
        %v2672 = vmul.f32 %v2668, %v2671
        %v2673 = vsub.f32 1.0, %v2672
        %v2674 = vmul.f32 %v2671, %v2673
        %v2675 = vadd.f32 %v2671, %v2674
        %vm2676 = vweird.f32 %v2668
        %vm2677 = vweird.f32 %v2671
        %vm2678 = vmor %vm2676, %vm2677
        %v2679 = vsel %vm2678, %v2671, %v2675
        %v2680 = vand.u32 2147483647, %v2668
        %vm2681 = vcmp.eq.f32.partialorder %v2680, 8.507059e+37
        %v2682 = vand.u32 %v2668, 2147483648
        %v2683 = vor.u32 1.1754944e-38, %v2682
        %v2684 = vsel %vm2681, %v2683, %v2679
        %v2685 = vrcp.pop %v2670
        %v2686 = vmul.f32 %v2670, %v2685
        %v2687 = vsub.f32 1.0, %v2686
        %v2688 = vmul.f32 %v2685, %v2687
        %v2689 = vadd.f32 %v2685, %v2688
        %vm2690 = vweird.f32 %v2670
        %vm2691 = vweird.f32 %v2685
        %vm2692 = vmor %vm2690, %vm2691
        %v2693 = vsel %vm2692, %v2685, %v2689
        %v2694 = vand.u32 2147483647, %v2670
        %vm2695 = vcmp.eq.f32.partialorder %v2694, 8.507059e+37
        %v2696 = vand.u32 %v2670, 2147483648
        %v2697 = vor.u32 1.1754944e-38, %v2696
        %v2698 = vsel %vm2695, %v2697, %v2693
        %v2699 = vmul.f32 %v2664, %v2684
        %v2700 = vmul.f32 %v2666, %v2698
        %2701 = vst [vmem:[%s468] sm:$0xff] %v2699
        %2702 = vst [vmem:[%s468 + $0x8] sm:$0xff] %v2700
        %s2703 = sand.u32 %s323, 1
        %s2704 = scalar_lea.sflag [#allocation3], %s2703
        %s2705 = sand.u32 %s323, 1
        %s2706 = smul.addr %s2705, 16
        %s2707 = scalar_lea.vmem [#allocation2], %s2706
        // Predicated region
        $region73: #{tpu_custom_call.1} parent=71 // pred_check
          %p2708 = pneg %p333
        $region74: #{tpu_custom_call.1} parent=71 // pred_check_branch
          %2710 = sbr.rel (%p2708) target = $region76
        $region75: #{tpu_custom_call.1} parent=71 // pred_region
          %s2711 = smul.u32 2, %s27
          %2713 = vsyncadd %s2704, 0
          %s2714 = smul.addr %s2711, 8
          %s2715 = scalar_lea.hbm %s13, %s2714
          %s2716 = sshll.u32 %s2707, 4
          %s2717 = int_to_ptr.vmem [resolvable:$true] %s2716
          %s2718 = sshll.u32 %s2715, 4
          %s2719 = int_to_ptr.hbm [resolvable:$true] %s2718
          %2724 = dma.vmem_to_hbm [thread:$0]  %s2717, 256, %s2719, %s2704, 128, 128, 8
        $region76: #{tpu_custom_call.1} parent=71 // pred_fallthru
          _
      $region72: #{tpu_custom_call.1} parent=5 // pred_fallthru
        _
      %p2725 = scmp.le.s32.totalorder 2, %s22
      // Predicated region
      $region77: #{tpu_custom_call.1} parent=5 // pred_check
        %p2726 = pneg %p2725
      $region78: #{tpu_custom_call.1} parent=5 // pred_check_branch
        %2728 = sbr.rel (%p2726) target = $region80
      $region79: #{tpu_custom_call.1} parent=5 // pred_region
        %s2729 = ssub.s32 %s22, 2
        // Predicated region
        $region81: #{tpu_custom_call.1} parent=79 // pred_check
          %p2730 = pneg %p339
        $region82: #{tpu_custom_call.1} parent=79 // pred_check_branch
          %2732 = sbr.rel (%p2730) target = $region84
        $region83: #{tpu_custom_call.1} parent=79 // pred_region
          %s2733 = sand.u32 %s324, 1
          %s2734 = scalar_lea.sflag [#allocation3], %s2733
          %s2735 = sand.u32 %s324, 1
          %s2736 = smul.addr %s2735, 16
          %s2737 = scalar_lea.vmem [#allocation2], %s2736
          %2739 = dma.done %s2734, 256
        $region84: #{tpu_custom_call.1} parent=79 // pred_fallthru
          _
      $region80: #{tpu_custom_call.1} parent=5 // pred_fallthru
        _
    $region6: #{tpu_custom_call.1} parent=1 // loop_footer
      %s26 = sadd.s32 1, %s22
    $region7: #{tpu_custom_call.1} parent=1 // loop_footer_branch
      %21 = sbr.rel target = $region3
    $region8: #{tpu_custom_call.1} parent=1 // loop_exit
      _
    %2740 = vsyncpa [#allocation3], 1
    %s2741 = scalar_lea.sflag [#allocation3], 1
    %2742 = vsyncpa %s2741, 1

</llo_original>
